<compile_context>
chip_gen: v5e
topology: v5e:2x2
jax: 0.10.0
libtpu: 0.0.40
codegen_flags: <defaults>
</compile_context>

<pallas_src>
import jax
import jax.numpy as jnp
from jax.experimental import pallas as pl
from jax.experimental.pallas import tpu as pltpu  # noqa: F401  (not needed at demo size)


_WEIGHT_KEYS = ("w1h_cat", "w1h_in", "w1h_hid",
                "w1o_cat", "w1o_in", "w1o_hid",
                "w2_h", "w2_o", "b1h", "b1o", "b2")


def _rnn_kernel(cat_ref, x_ref, h0_ref,
                w1h_cat_ref, w1h_in_ref, w1h_hid_ref,
                w1o_cat_ref, w1o_in_ref, w1o_hid_ref,
                w2_h_ref, w2_o_ref,
                b1h_ref, b1o_ref, b2_ref,
                out_ref, h_ref):
    """Whole T-step recurrence in one kernel invocation (no grid)."""
    T, B, _ = x_ref.shape
    cdt = w1h_in_ref.dtype            # MXU operand dtype (bf16 by default)

    # --- Hoisted once: weight/bias loads and input casts. ------------------
    w1h_hid = w1h_hid_ref[...]
    w1o_hid = w1o_hid_ref[...]
    w2_h = w2_h_ref[...]
    w2_o = w2_o_ref[...]
    b2 = b2_ref[...]                  # (1, O) f32

    cat = cat_ref[...].astype(cdt)    # (B, nc)
    x_all = x_ref[...].astype(cdt)    # (T, B, ni)

    # Time-invariant category contribution + stage-1 biases, computed once.
    base_h = (jnp.dot(cat, w1h_cat_ref[...],
                      preferred_element_type=jnp.float32)
              + b1h_ref[...])         # (B, H) f32
    base_o = (jnp.dot(cat, w1o_cat_ref[...],
                      preferred_element_type=jnp.float32)
              + b1o_ref[...])         # (B, O) f32

    w1h_in = w1h_in_ref[...]
    w1o_in = w1o_in_ref[...]

    # --- Recurrence: T is small & static -> fully unrolled Python loop. ----
    # The hidden state `h` stays in registers; only the final value hits VMEM.
    h = h0_ref[...]                   # (B, H) f32
    for t in range(T):
        x_t = x_all[t]                # static index -> no dynamic slicing
        h_c = h.astype(cdt)

        # Stage 1: i2h / i2o kept as separate dots (no mid-vreg lane slices).
        h_new = (base_h
                 + jnp.dot(x_t, w1h_in, preferred_element_type=jnp.float32)
                 + jnp.dot(h_c, w1h_hid, preferred_element_type=jnp.float32))
        out1 = (base_o
                + jnp.dot(x_t, w1o_in, preferred_element_type=jnp.float32)
                + jnp.dot(h_c, w1o_hid, preferred_element_type=jnp.float32))

        # Stage 2: o2o applied to cat(hidden, output) via summed partial dots.
        logits = (jnp.dot(h_new.astype(cdt), w2_h,
                          preferred_element_type=jnp.float32)
                  + jnp.dot(out1.astype(cdt), w2_o,
                            preferred_element_type=jnp.float32)
                  + b2)

        # Dropout(p=0.1) -> identity (eval mode).
        # Numerically stable log_softmax over features, in f32.
        m = jnp.max(logits, axis=-1, keepdims=True)
        shifted = logits - m
        lse = jnp.log(jnp.sum(jnp.exp(shifted), axis=-1, keepdims=True))

        # Store into the VMEM-resident output block (static index); the HBM
        # writeback is a single DMA of the whole (T, B, O) block at the end.
        out_ref[t] = (shifted - lse).astype(out_ref.dtype)
        h = h_new

    h_ref[...] = h                    # written once after the loop


def prepare_params(params, n_categories, input_size,
                   compute_dtype=jnp.bfloat16):
    """One-time param prep: transpose + row-split; i2h / i2o kept un-fused."""
    H = params["w_i2h"].shape[0]      # PyTorch weight layout: (out, in)
    O = params["w_i2o"].shape[0]
    nc, ni = n_categories, input_size

    w1h = params["w_i2h"].T           # (nc+ni+H, H)
    w1o = params["w_i2o"].T           # (nc+ni+H, O)
    w2 = params["w_o2o"].T            # (H+O, O)

    cd = compute_dtype
    return {
        "w1h_cat": w1h[:nc].astype(cd),
        "w1h_in": w1h[nc:nc + ni].astype(cd),
        "w1h_hid": w1h[nc + ni:].astype(cd),
        "w1o_cat": w1o[:nc].astype(cd),
        "w1o_in": w1o[nc:nc + ni].astype(cd),
        "w1o_hid": w1o[nc + ni:].astype(cd),
        "w2_h": w2[:H].astype(cd),
        "w2_o": w2[H:].astype(cd),
        "b1h": params["b_i2h"].reshape(1, H).astype(jnp.float32),
        "b1o": params["b_i2o"].reshape(1, O).astype(jnp.float32),
        "b2": params["b_o2o"].reshape(1, O).astype(jnp.float32),
        "dims": (nc, ni, H, O),
    }


def rnn_forward_seq(category, inputs_seq, h0, prepped):
    """Runs T fused RNN steps. Returns (log_probs (T,B,O), final hidden (B,H))."""
    T, B, ni = inputs_seq.shape
    nc, ni_p, H, O = prepped["dims"]
    assert ni == ni_p
    assert category.shape == (B, nc) and h0.shape == (B, H)

    # Pad batch to a full f32 sublane group (8 rows): vregs / MXU rows are
    # otherwise <25% utilized at B=2.  Padded rows are zeros, sliced away.
    B_pad = ((B + 7) // 8) * 8
    pad = B_pad - B
    if pad:
        category = jnp.pad(category, ((0, pad), (0, 0)))
        inputs_seq = jnp.pad(inputs_seq, ((0, 0), (0, pad), (0, 0)))
        h0 = jnp.pad(h0, ((0, pad), (0, 0)))

    C = nc + ni + H
    weight_bytes = sum(int(prepped[k].nbytes) for k in _WEIGHT_KEYS)
    cost = pl.CostEstimate(
        flops=2 * T * B_pad * (C * (H + O) + (H + O) * O),
        transcendentals=T * B_pad * (O + 1),
        bytes_accessed=int(category.nbytes + inputs_seq.nbytes + h0.nbytes)
        + weight_bytes + 4 * (T * B_pad * O + B_pad * H),
    )

    # No grid: everything is a whole-array VMEM block, DMA'd exactly once
    # (single-buffered), and the recurrence runs inside one kernel body.
    log_probs, h_final = pl.pallas_call(
        _rnn_kernel,
        out_shape=(jax.ShapeDtypeStruct((T, B_pad, O), jnp.float32),
                   jax.ShapeDtypeStruct((B_pad, H), jnp.float32)),
        cost_estimate=cost,
    )(category, inputs_seq, h0,
      prepped["w1h_cat"], prepped["w1h_in"], prepped["w1h_hid"],
      prepped["w1o_cat"], prepped["w1o_in"], prepped["w1o_hid"],
      prepped["w2_h"], prepped["w2_o"],
      prepped["b1h"], prepped["b1o"], prepped["b2"])

    return log_probs[:, :B], h_final[:B]


def rnn_forward(category, inp, hidden, prepped):
    """Single step (original module forward). Returns (log_probs, new_hidden)."""
    log_probs, new_hidden = rnn_forward_seq(category, inp[None], hidden, prepped)
    return log_probs[0], new_hidden


def init_params(key, n_categories, input_size, hidden_size, output_size):
    """Deterministic init matching nn.Linear default (uniform ±1/sqrt(fan_in))."""
    c_in = n_categories + input_size + hidden_size
    o_in = hidden_size + output_size
    ks = jax.random.split(key, 6)

    def lin(kw, kb, fan_in, fan_out):
        bound = 1.0 / jnp.sqrt(fan_in)
        w = jax.random.uniform(kw, (fan_out, fan_in), jnp.float32, -bound, bound)
        b = jax.random.uniform(kb, (fan_out,), jnp.float32, -bound, bound)
        return w, b

    w_i2h, b_i2h = lin(ks[0], ks[1], c_in, hidden_size)
    w_i2o, b_i2o = lin(ks[2], ks[3], c_in, output_size)
    w_o2o, b_o2o = lin(ks[4], ks[5], o_in, output_size)
    return {"w_i2h": w_i2h, "b_i2h": b_i2h,
            "w_i2o": w_i2o, "b_i2o": b_i2o,
            "w_o2o": w_o2o, "b_o2o": b_o2o}


def rnn_step_ref(category, inp, hidden, params):
    """Pure-JAX single-step reference (PyTorch semantics, f32)."""
    combined = jnp.concatenate([category, inp, hidden], axis=1)
    new_hidden = combined @ params["w_i2h"].T + params["b_i2h"]
    out = combined @ params["w_i2o"].T + params["b_i2o"]
    combined_out = jnp.concatenate([new_hidden, out], axis=1)
    out = combined_out @ params["w_o2o"].T + params["b_o2o"]
    out = jax.nn.log_softmax(out, axis=1)
    return out, new_hidden


def rnn_seq_ref(category, inputs_seq, h0, params):
    def step(h, x):
        out, h = rnn_step_ref(category, x, h, params)
        return h, out
    h_final, outs = jax.lax.scan(step, h0, inputs_seq)
    return outs, h_final


if __name__ == "__main__":
    B = 2
    T = 8
    n_categories = 4
    input_size = 16
    hidden_size = 32
    output_size = 16

    key = jax.random.PRNGKey(0)
    k_par, k_cat, k_in = jax.random.split(key, 3)

    params = init_params(k_par, n_categories, input_size, hidden_size,
                         output_size)
    prepped = prepare_params(params, n_categories, input_size,
                             compute_dtype=jnp.bfloat16)

    # One-hot category (fixed over the sequence) and one-hot input sequence,
    # zero initial hidden -- mirrors the char-rnn generation tutorial.
    category = jax.nn.one_hot(
        jax.random.randint(k_cat, (B,), 0, n_categories), n_categories,
        dtype=jnp.float32)
    inputs_seq = jax.nn.one_hot(
        jax.random.randint(k_in, (T, B), 0, input_size), input_size,
        dtype=jnp.float32)
    h0 = jnp.zeros((B, hidden_size), jnp.float32)

    # Fused T-step kernel.
    log_probs_seq, h_final = rnn_forward_seq(category, inputs_seq, h0, prepped)
    jax.block_until_ready((log_probs_seq, h_final))

    # Single-step path (matches the original module's forward signature).
    log_probs_0, h_1 = rnn_forward(category, inputs_seq[0], h0, prepped)
    jax.block_until_ready((log_probs_0, h_1))

    # Reference sharing the kernel's bf16 weight quantization (activations kept
    # f32), so the only divergence is the in-kernel bf16 operand casts.
    params_q = {k: v.astype(jnp.bfloat16).astype(jnp.float32)
                for k, v in params.items()}
    ref_lp_seq, ref_h_final = rnn_seq_ref(category, inputs_seq, h0, params_q)
    ref_lp0, ref_h1 = rnn_step_ref(category, inputs_seq[0], h0, params_q)

    assert log_probs_seq.shape == (T, B, output_size)
    assert h_final.shape == (B, hidden_size)
    assert log_probs_0.shape == (B, output_size)
    assert h_1.shape == (B, hidden_size)

    # Tolerance covers bf16 activation rounding vs the f32-activation reference.
    tol = dict(atol=5e-2, rtol=5e-2)
    assert jnp.allclose(log_probs_seq, ref_lp_seq, **tol)
    assert jnp.allclose(h_final, ref_h_final, **tol)
    assert jnp.allclose(log_probs_0, ref_lp0, **tol)
    assert jnp.allclose(h_1, ref_h1, **tol)

    print("KERNEL_OK")
</pallas_src>

<mosaic_0001>
module attributes {stable_mosaic.version = 11 : i64} {
  func.func @_rnn_kernel(%arg0: memref<8x4xf32, #tpu.memory_space<vmem>>, %arg1: memref<8x8x16xf32, #tpu.memory_space<vmem>>, %arg2: memref<8x32xf32, #tpu.memory_space<vmem>>, %arg3: memref<4x32xbf16, #tpu.memory_space<vmem>>, %arg4: memref<16x32xbf16, #tpu.memory_space<vmem>>, %arg5: memref<32x32xbf16, #tpu.memory_space<vmem>>, %arg6: memref<4x16xbf16, #tpu.memory_space<vmem>>, %arg7: memref<16x16xbf16, #tpu.memory_space<vmem>>, %arg8: memref<32x16xbf16, #tpu.memory_space<vmem>>, %arg9: memref<32x16xbf16, #tpu.memory_space<vmem>>, %arg10: memref<16x16xbf16, #tpu.memory_space<vmem>>, %arg11: memref<1x32xf32, #tpu.memory_space<vmem>>, %arg12: memref<1x16xf32, #tpu.memory_space<vmem>>, %arg13: memref<1x16xf32, #tpu.memory_space<vmem>>, %arg14: memref<8x8x16xf32, #tpu.memory_space<vmem>>, %arg15: memref<8x32xf32, #tpu.memory_space<vmem>>) attributes {dimension_semantics = [], scalar_prefetch = 0 : i64, scratch_operands = 0 : i64, tpu.core_type = #tpu.core_type<tc>} {
    %c0 = arith.constant 0 : index
    %c0_0 = arith.constant 0 : index
    %0 = vector.load %arg5[%c0, %c0_0] : memref<32x32xbf16, #tpu.memory_space<vmem>>, vector<32x32xbf16>
    %c0_1 = arith.constant 0 : index
    %c0_2 = arith.constant 0 : index
    %1 = vector.load %arg8[%c0_1, %c0_2] : memref<32x16xbf16, #tpu.memory_space<vmem>>, vector<32x16xbf16>
    %c0_3 = arith.constant 0 : index
    %c0_4 = arith.constant 0 : index
    %2 = vector.load %arg9[%c0_3, %c0_4] : memref<32x16xbf16, #tpu.memory_space<vmem>>, vector<32x16xbf16>
    %c0_5 = arith.constant 0 : index
    %c0_6 = arith.constant 0 : index
    %3 = vector.load %arg10[%c0_5, %c0_6] : memref<16x16xbf16, #tpu.memory_space<vmem>>, vector<16x16xbf16>
    %c0_7 = arith.constant 0 : index
    %c0_8 = arith.constant 0 : index
    %4 = vector.load %arg13[%c0_7, %c0_8] : memref<1x16xf32, #tpu.memory_space<vmem>>, vector<1x16xf32>
    %c0_9 = arith.constant 0 : index
    %c0_10 = arith.constant 0 : index
    %5 = vector.load %arg0[%c0_9, %c0_10] : memref<8x4xf32, #tpu.memory_space<vmem>>, vector<8x4xf32>
    %6 = arith.truncf %5 : vector<8x4xf32> to vector<8x4xbf16>
    %c0_11 = arith.constant 0 : index
    %c0_12 = arith.constant 0 : index
    %c0_13 = arith.constant 0 : index
    %7 = vector.load %arg1[%c0_11, %c0_12, %c0_13] : memref<8x8x16xf32, #tpu.memory_space<vmem>>, vector<8x8x16xf32>
    %8 = arith.truncf %7 : vector<8x8x16xf32> to vector<8x8x16xbf16>
    %c0_14 = arith.constant 0 : index
    %c0_15 = arith.constant 0 : index
    %9 = vector.load %arg3[%c0_14, %c0_15] : memref<4x32xbf16, #tpu.memory_space<vmem>>, vector<4x32xbf16>
    %cst = arith.constant dense<0.000000e+00> : vector<8x32xf32>
    %10 = tpu.matmul %6, %9, %cst {dimension_numbers = #tpu.dot_dimension_numbers<[1], [0], [0], [1], [0, 0, 1, 1], [], []>} : vector<8x4xbf16>, vector<4x32xbf16>, vector<8x32xf32> -> vector<8x32xf32>
    %c0_16 = arith.constant 0 : index
    %c0_17 = arith.constant 0 : index
    %11 = vector.load %arg11[%c0_16, %c0_17] : memref<1x32xf32, #tpu.memory_space<vmem>>, vector<1x32xf32>
    %12 = vector.broadcast %11 : vector<1x32xf32> to vector<8x32xf32>
    %13 = arith.addf %10, %12 : vector<8x32xf32>
    %c0_18 = arith.constant 0 : index
    %c0_19 = arith.constant 0 : index
    %14 = vector.load %arg6[%c0_18, %c0_19] : memref<4x16xbf16, #tpu.memory_space<vmem>>, vector<4x16xbf16>
    %cst_20 = arith.constant dense<0.000000e+00> : vector<8x16xf32>
    %15 = tpu.matmul %6, %14, %cst_20 {dimension_numbers = #tpu.dot_dimension_numbers<[1], [0], [0], [1], [0, 0, 1, 1], [], []>} : vector<8x4xbf16>, vector<4x16xbf16>, vector<8x16xf32> -> vector<8x16xf32>
    %c0_21 = arith.constant 0 : index
    %c0_22 = arith.constant 0 : index
    %16 = vector.load %arg12[%c0_21, %c0_22] : memref<1x16xf32, #tpu.memory_space<vmem>>, vector<1x16xf32>
    %17 = vector.broadcast %16 : vector<1x16xf32> to vector<8x16xf32>
    %18 = arith.addf %15, %17 : vector<8x16xf32>
    %c0_23 = arith.constant 0 : index
    %c0_24 = arith.constant 0 : index
    %19 = vector.load %arg4[%c0_23, %c0_24] : memref<16x32xbf16, #tpu.memory_space<vmem>>, vector<16x32xbf16>
    %c0_25 = arith.constant 0 : index
    %c0_26 = arith.constant 0 : index
    %20 = vector.load %arg7[%c0_25, %c0_26] : memref<16x16xbf16, #tpu.memory_space<vmem>>, vector<16x16xbf16>
    %c0_27 = arith.constant 0 : index
    %c0_28 = arith.constant 0 : index
    %21 = vector.load %arg2[%c0_27, %c0_28] : memref<8x32xf32, #tpu.memory_space<vmem>>, vector<8x32xf32>
    %22 = vector.extract_strided_slice %8 {offsets = [0, 0, 0], sizes = [1, 8, 16], strides = [1, 1, 1]} : vector<8x8x16xbf16> to vector<1x8x16xbf16>
    %23 = vector.shape_cast %22 : vector<1x8x16xbf16> to vector<8x16xbf16>
    %24 = arith.truncf %21 : vector<8x32xf32> to vector<8x32xbf16>
    %cst_29 = arith.constant dense<0.000000e+00> : vector<8x32xf32>
    %25 = tpu.matmul %23, %19, %cst_29 {dimension_numbers = #tpu.dot_dimension_numbers<[1], [0], [0], [1], [0, 0, 1, 1], [], []>} : vector<8x16xbf16>, vector<16x32xbf16>, vector<8x32xf32> -> vector<8x32xf32>
    %26 = arith.addf %13, %25 : vector<8x32xf32>
    %cst_30 = arith.constant dense<0.000000e+00> : vector<8x32xf32>
    %27 = tpu.matmul %24, %0, %cst_30 {dimension_numbers = #tpu.dot_dimension_numbers<[1], [0], [0], [1], [0, 0, 1, 1], [], []>} : vector<8x32xbf16>, vector<32x32xbf16>, vector<8x32xf32> -> vector<8x32xf32>
    %28 = arith.addf %26, %27 : vector<8x32xf32>
    %cst_31 = arith.constant dense<0.000000e+00> : vector<8x16xf32>
    %29 = tpu.matmul %23, %20, %cst_31 {dimension_numbers = #tpu.dot_dimension_numbers<[1], [0], [0], [1], [0, 0, 1, 1], [], []>} : vector<8x16xbf16>, vector<16x16xbf16>, vector<8x16xf32> -> vector<8x16xf32>
    %30 = arith.addf %18, %29 : vector<8x16xf32>
    %cst_32 = arith.constant dense<0.000000e+00> : vector<8x16xf32>
    %31 = tpu.matmul %24, %1, %cst_32 {dimension_numbers = #tpu.dot_dimension_numbers<[1], [0], [0], [1], [0, 0, 1, 1], [], []>} : vector<8x32xbf16>, vector<32x16xbf16>, vector<8x16xf32> -> vector<8x16xf32>
    %32 = arith.addf %30, %31 : vector<8x16xf32>
    %33 = arith.truncf %28 : vector<8x32xf32> to vector<8x32xbf16>
    %cst_33 = arith.constant dense<0.000000e+00> : vector<8x16xf32>
    %34 = tpu.matmul %33, %2, %cst_33 {dimension_numbers = #tpu.dot_dimension_numbers<[1], [0], [0], [1], [0, 0, 1, 1], [], []>} : vector<8x32xbf16>, vector<32x16xbf16>, vector<8x16xf32> -> vector<8x16xf32>
    %35 = arith.truncf %32 : vector<8x16xf32> to vector<8x16xbf16>
    %cst_34 = arith.constant dense<0.000000e+00> : vector<8x16xf32>
    %36 = tpu.matmul %35, %3, %cst_34 {dimension_numbers = #tpu.dot_dimension_numbers<[1], [0], [0], [1], [0, 0, 1, 1], [], []>} : vector<8x16xbf16>, vector<16x16xbf16>, vector<8x16xf32> -> vector<8x16xf32>
    %37 = arith.addf %34, %36 : vector<8x16xf32>
    %38 = vector.broadcast %4 : vector<1x16xf32> to vector<8x16xf32>
    %39 = arith.addf %37, %38 : vector<8x16xf32>
    %cst_35 = arith.constant dense<0xFF800000> : vector<8xf32>
    %40 = vector.multi_reduction <maximumf>, %39, %cst_35 [1] : vector<8x16xf32> to vector<8xf32>
    %41 = vector.shape_cast %40 : vector<8xf32> to vector<8x1xf32>
    %42 = vector.broadcast %41 : vector<8x1xf32> to vector<8x16xf32>
    %43 = arith.subf %39, %42 : vector<8x16xf32>
    %44 = math.exp %43 : vector<8x16xf32>
    %cst_36 = arith.constant dense<0.000000e+00> : vector<8xf32>
    %45 = vector.multi_reduction <add>, %44, %cst_36 [1] : vector<8x16xf32> to vector<8xf32>
    %46 = vector.shape_cast %45 : vector<8xf32> to vector<8x1xf32>
    %47 = math.log %46 : vector<8x1xf32>
    %48 = vector.broadcast %47 : vector<8x1xf32> to vector<8x16xf32>
    %49 = arith.subf %43, %48 : vector<8x16xf32>
    %c0_37 = arith.constant 0 : index
    %c0_38 = arith.constant 0 : index
    %c0_39 = arith.constant 0 : index
    %50 = vector.load %arg14[%c0_37, %c0_38, %c0_39] : memref<8x8x16xf32, #tpu.memory_space<vmem>>, vector<1x8x16xf32>
    %51 = vector.shape_cast %50 : vector<1x8x16xf32> to vector<8x16xf32>
    %52 = vector.shape_cast %49 : vector<8x16xf32> to vector<1x8x16xf32>
    tpu.vector_store %arg14[%c0_37, %c0_38, %c0_39], %52 {strides = array<i32>} : memref<8x8x16xf32, #tpu.memory_space<vmem>>, vector<1x8x16xf32>,
    %53 = vector.extract_strided_slice %8 {offsets = [1, 0, 0], sizes = [1, 8, 16], strides = [1, 1, 1]} : vector<8x8x16xbf16> to vector<1x8x16xbf16>
    %54 = vector.shape_cast %53 : vector<1x8x16xbf16> to vector<8x16xbf16>
    %55 = arith.truncf %28 : vector<8x32xf32> to vector<8x32xbf16>
    %cst_40 = arith.constant dense<0.000000e+00> : vector<8x32xf32>
    %56 = tpu.matmul %54, %19, %cst_40 {dimension_numbers = #tpu.dot_dimension_numbers<[1], [0], [0], [1], [0, 0, 1, 1], [], []>} : vector<8x16xbf16>, vector<16x32xbf16>, vector<8x32xf32> -> vector<8x32xf32>
    %57 = arith.addf %13, %56 : vector<8x32xf32>
    %cst_41 = arith.constant dense<0.000000e+00> : vector<8x32xf32>
    %58 = tpu.matmul %55, %0, %cst_41 {dimension_numbers = #tpu.dot_dimension_numbers<[1], [0], [0], [1], [0, 0, 1, 1], [], []>} : vector<8x32xbf16>, vector<32x32xbf16>, vector<8x32xf32> -> vector<8x32xf32>
    %59 = arith.addf %57, %58 : vector<8x32xf32>
    %cst_42 = arith.constant dense<0.000000e+00> : vector<8x16xf32>
    %60 = tpu.matmul %54, %20, %cst_42 {dimension_numbers = #tpu.dot_dimension_numbers<[1], [0], [0], [1], [0, 0, 1, 1], [], []>} : vector<8x16xbf16>, vector<16x16xbf16>, vector<8x16xf32> -> vector<8x16xf32>
    %61 = arith.addf %18, %60 : vector<8x16xf32>
    %cst_43 = arith.constant dense<0.000000e+00> : vector<8x16xf32>
    %62 = tpu.matmul %55, %1, %cst_43 {dimension_numbers = #tpu.dot_dimension_numbers<[1], [0], [0], [1], [0, 0, 1, 1], [], []>} : vector<8x32xbf16>, vector<32x16xbf16>, vector<8x16xf32> -> vector<8x16xf32>
    %63 = arith.addf %61, %62 : vector<8x16xf32>
    %64 = arith.truncf %59 : vector<8x32xf32> to vector<8x32xbf16>
    %cst_44 = arith.constant dense<0.000000e+00> : vector<8x16xf32>
    %65 = tpu.matmul %64, %2, %cst_44 {dimension_numbers = #tpu.dot_dimension_numbers<[1], [0], [0], [1], [0, 0, 1, 1], [], []>} : vector<8x32xbf16>, vector<32x16xbf16>, vector<8x16xf32> -> vector<8x16xf32>
    %66 = arith.truncf %63 : vector<8x16xf32> to vector<8x16xbf16>
    %cst_45 = arith.constant dense<0.000000e+00> : vector<8x16xf32>
    %67 = tpu.matmul %66, %3, %cst_45 {dimension_numbers = #tpu.dot_dimension_numbers<[1], [0], [0], [1], [0, 0, 1, 1], [], []>} : vector<8x16xbf16>, vector<16x16xbf16>, vector<8x16xf32> -> vector<8x16xf32>
    %68 = arith.addf %65, %67 : vector<8x16xf32>
    %69 = vector.broadcast %4 : vector<1x16xf32> to vector<8x16xf32>
    %70 = arith.addf %68, %69 : vector<8x16xf32>
    %cst_46 = arith.constant dense<0xFF800000> : vector<8xf32>
    %71 = vector.multi_reduction <maximumf>, %70, %cst_46 [1] : vector<8x16xf32> to vector<8xf32>
    %72 = vector.shape_cast %71 : vector<8xf32> to vector<8x1xf32>
    %73 = vector.broadcast %72 : vector<8x1xf32> to vector<8x16xf32>
    %74 = arith.subf %70, %73 : vector<8x16xf32>
    %75 = math.exp %74 : vector<8x16xf32>
    %cst_47 = arith.constant dense<0.000000e+00> : vector<8xf32>
    %76 = vector.multi_reduction <add>, %75, %cst_47 [1] : vector<8x16xf32> to vector<8xf32>
    %77 = vector.shape_cast %76 : vector<8xf32> to vector<8x1xf32>
    %78 = math.log %77 : vector<8x1xf32>
    %79 = vector.broadcast %78 : vector<8x1xf32> to vector<8x16xf32>
    %80 = arith.subf %74, %79 : vector<8x16xf32>
    %c1 = arith.constant 1 : index
    %c0_48 = arith.constant 0 : index
    %c0_49 = arith.constant 0 : index
    %81 = vector.load %arg14[%c1, %c0_48, %c0_49] : memref<8x8x16xf32, #tpu.memory_space<vmem>>, vector<1x8x16xf32>
    %82 = vector.shape_cast %81 : vector<1x8x16xf32> to vector<8x16xf32>
    %83 = vector.shape_cast %80 : vector<8x16xf32> to vector<1x8x16xf32>
    tpu.vector_store %arg14[%c1, %c0_48, %c0_49], %83 {strides = array<i32>} : memref<8x8x16xf32, #tpu.memory_space<vmem>>, vector<1x8x16xf32>,
    %84 = vector.extract_strided_slice %8 {offsets = [2, 0, 0], sizes = [1, 8, 16], strides = [1, 1, 1]} : vector<8x8x16xbf16> to vector<1x8x16xbf16>
    %85 = vector.shape_cast %84 : vector<1x8x16xbf16> to vector<8x16xbf16>
    %86 = arith.truncf %59 : vector<8x32xf32> to vector<8x32xbf16>
    %cst_50 = arith.constant dense<0.000000e+00> : vector<8x32xf32>
    %87 = tpu.matmul %85, %19, %cst_50 {dimension_numbers = #tpu.dot_dimension_numbers<[1], [0], [0], [1], [0, 0, 1, 1], [], []>} : vector<8x16xbf16>, vector<16x32xbf16>, vector<8x32xf32> -> vector<8x32xf32>
    %88 = arith.addf %13, %87 : vector<8x32xf32>
    %cst_51 = arith.constant dense<0.000000e+00> : vector<8x32xf32>
    %89 = tpu.matmul %86, %0, %cst_51 {dimension_numbers = #tpu.dot_dimension_numbers<[1], [0], [0], [1], [0, 0, 1, 1], [], []>} : vector<8x32xbf16>, vector<32x32xbf16>, vector<8x32xf32> -> vector<8x32xf32>
    %90 = arith.addf %88, %89 : vector<8x32xf32>
    %cst_52 = arith.constant dense<0.000000e+00> : vector<8x16xf32>
    %91 = tpu.matmul %85, %20, %cst_52 {dimension_numbers = #tpu.dot_dimension_numbers<[1], [0], [0], [1], [0, 0, 1, 1], [], []>} : vector<8x16xbf16>, vector<16x16xbf16>, vector<8x16xf32> -> vector<8x16xf32>
    %92 = arith.addf %18, %91 : vector<8x16xf32>
    %cst_53 = arith.constant dense<0.000000e+00> : vector<8x16xf32>
    %93 = tpu.matmul %86, %1, %cst_53 {dimension_numbers = #tpu.dot_dimension_numbers<[1], [0], [0], [1], [0, 0, 1, 1], [], []>} : vector<8x32xbf16>, vector<32x16xbf16>, vector<8x16xf32> -> vector<8x16xf32>
    %94 = arith.addf %92, %93 : vector<8x16xf32>
    %95 = arith.truncf %90 : vector<8x32xf32> to vector<8x32xbf16>
    %cst_54 = arith.constant dense<0.000000e+00> : vector<8x16xf32>
    %96 = tpu.matmul %95, %2, %cst_54 {dimension_numbers = #tpu.dot_dimension_numbers<[1], [0], [0], [1], [0, 0, 1, 1], [], []>} : vector<8x32xbf16>, vector<32x16xbf16>, vector<8x16xf32> -> vector<8x16xf32>
    %97 = arith.truncf %94 : vector<8x16xf32> to vector<8x16xbf16>
    %cst_55 = arith.constant dense<0.000000e+00> : vector<8x16xf32>
    %98 = tpu.matmul %97, %3, %cst_55 {dimension_numbers = #tpu.dot_dimension_numbers<[1], [0], [0], [1], [0, 0, 1, 1], [], []>} : vector<8x16xbf16>, vector<16x16xbf16>, vector<8x16xf32> -> vector<8x16xf32>
    %99 = arith.addf %96, %98 : vector<8x16xf32>
    %100 = vector.broadcast %4 : vector<1x16xf32> to vector<8x16xf32>
    %101 = arith.addf %99, %100 : vector<8x16xf32>
    %cst_56 = arith.constant dense<0xFF800000> : vector<8xf32>
    %102 = vector.multi_reduction <maximumf>, %101, %cst_56 [1] : vector<8x16xf32> to vector<8xf32>
    %103 = vector.shape_cast %102 : vector<8xf32> to vector<8x1xf32>
    %104 = vector.broadcast %103 : vector<8x1xf32> to vector<8x16xf32>
    %105 = arith.subf %101, %104 : vector<8x16xf32>
    %106 = math.exp %105 : vector<8x16xf32>
    %cst_57 = arith.constant dense<0.000000e+00> : vector<8xf32>
    %107 = vector.multi_reduction <add>, %106, %cst_57 [1] : vector<8x16xf32> to vector<8xf32>
    %108 = vector.shape_cast %107 : vector<8xf32> to vector<8x1xf32>
    %109 = math.log %108 : vector<8x1xf32>
    %110 = vector.broadcast %109 : vector<8x1xf32> to vector<8x16xf32>
    %111 = arith.subf %105, %110 : vector<8x16xf32>
    %c2 = arith.constant 2 : index
    %c0_58 = arith.constant 0 : index
    %c0_59 = arith.constant 0 : index
    %112 = vector.load %arg14[%c2, %c0_58, %c0_59] : memref<8x8x16xf32, #tpu.memory_space<vmem>>, vector<1x8x16xf32>
    %113 = vector.shape_cast %112 : vector<1x8x16xf32> to vector<8x16xf32>
    %114 = vector.shape_cast %111 : vector<8x16xf32> to vector<1x8x16xf32>
    tpu.vector_store %arg14[%c2, %c0_58, %c0_59], %114 {strides = array<i32>} : memref<8x8x16xf32, #tpu.memory_space<vmem>>, vector<1x8x16xf32>,
    %115 = vector.extract_strided_slice %8 {offsets = [3, 0, 0], sizes = [1, 8, 16], strides = [1, 1, 1]} : vector<8x8x16xbf16> to vector<1x8x16xbf16>
    %116 = vector.shape_cast %115 : vector<1x8x16xbf16> to vector<8x16xbf16>
    %117 = arith.truncf %90 : vector<8x32xf32> to vector<8x32xbf16>
    %cst_60 = arith.constant dense<0.000000e+00> : vector<8x32xf32>
    %118 = tpu.matmul %116, %19, %cst_60 {dimension_numbers = #tpu.dot_dimension_numbers<[1], [0], [0], [1], [0, 0, 1, 1], [], []>} : vector<8x16xbf16>, vector<16x32xbf16>, vector<8x32xf32> -> vector<8x32xf32>
    %119 = arith.addf %13, %118 : vector<8x32xf32>
    %cst_61 = arith.constant dense<0.000000e+00> : vector<8x32xf32>
    %120 = tpu.matmul %117, %0, %cst_61 {dimension_numbers = #tpu.dot_dimension_numbers<[1], [0], [0], [1], [0, 0, 1, 1], [], []>} : vector<8x32xbf16>, vector<32x32xbf16>, vector<8x32xf32> -> vector<8x32xf32>
    %121 = arith.addf %119, %120 : vector<8x32xf32>
    %cst_62 = arith.constant dense<0.000000e+00> : vector<8x16xf32>
    %122 = tpu.matmul %116, %20, %cst_62 {dimension_numbers = #tpu.dot_dimension_numbers<[1], [0], [0], [1], [0, 0, 1, 1], [], []>} : vector<8x16xbf16>, vector<16x16xbf16>, vector<8x16xf32> -> vector<8x16xf32>
    %123 = arith.addf %18, %122 : vector<8x16xf32>
    %cst_63 = arith.constant dense<0.000000e+00> : vector<8x16xf32>
    %124 = tpu.matmul %117, %1, %cst_63 {dimension_numbers = #tpu.dot_dimension_numbers<[1], [0], [0], [1], [0, 0, 1, 1], [], []>} : vector<8x32xbf16>, vector<32x16xbf16>, vector<8x16xf32> -> vector<8x16xf32>
    %125 = arith.addf %123, %124 : vector<8x16xf32>
    %126 = arith.truncf %121 : vector<8x32xf32> to vector<8x32xbf16>
    %cst_64 = arith.constant dense<0.000000e+00> : vector<8x16xf32>
    %127 = tpu.matmul %126, %2, %cst_64 {dimension_numbers = #tpu.dot_dimension_numbers<[1], [0], [0], [1], [0, 0, 1, 1], [], []>} : vector<8x32xbf16>, vector<32x16xbf16>, vector<8x16xf32> -> vector<8x16xf32>
    %128 = arith.truncf %125 : vector<8x16xf32> to vector<8x16xbf16>
    %cst_65 = arith.constant dense<0.000000e+00> : vector<8x16xf32>
    %129 = tpu.matmul %128, %3, %cst_65 {dimension_numbers = #tpu.dot_dimension_numbers<[1], [0], [0], [1], [0, 0, 1, 1], [], []>} : vector<8x16xbf16>, vector<16x16xbf16>, vector<8x16xf32> -> vector<8x16xf32>
    %130 = arith.addf %127, %129 : vector<8x16xf32>
    %131 = vector.broadcast %4 : vector<1x16xf32> to vector<8x16xf32>
    %132 = arith.addf %130, %131 : vector<8x16xf32>
    %cst_66 = arith.constant dense<0xFF800000> : vector<8xf32>
    %133 = vector.multi_reduction <maximumf>, %132, %cst_66 [1] : vector<8x16xf32> to vector<8xf32>
    %134 = vector.shape_cast %133 : vector<8xf32> to vector<8x1xf32>
    %135 = vector.broadcast %134 : vector<8x1xf32> to vector<8x16xf32>
    %136 = arith.subf %132, %135 : vector<8x16xf32>
    %137 = math.exp %136 : vector<8x16xf32>
    %cst_67 = arith.constant dense<0.000000e+00> : vector<8xf32>
    %138 = vector.multi_reduction <add>, %137, %cst_67 [1] : vector<8x16xf32> to vector<8xf32>
    %139 = vector.shape_cast %138 : vector<8xf32> to vector<8x1xf32>
    %140 = math.log %139 : vector<8x1xf32>
    %141 = vector.broadcast %140 : vector<8x1xf32> to vector<8x16xf32>
    %142 = arith.subf %136, %141 : vector<8x16xf32>
    %c3 = arith.constant 3 : index
    %c0_68 = arith.constant 0 : index
    %c0_69 = arith.constant 0 : index
    %143 = vector.load %arg14[%c3, %c0_68, %c0_69] : memref<8x8x16xf32, #tpu.memory_space<vmem>>, vector<1x8x16xf32>
    %144 = vector.shape_cast %143 : vector<1x8x16xf32> to vector<8x16xf32>
    %145 = vector.shape_cast %142 : vector<8x16xf32> to vector<1x8x16xf32>
    tpu.vector_store %arg14[%c3, %c0_68, %c0_69], %145 {strides = array<i32>} : memref<8x8x16xf32, #tpu.memory_space<vmem>>, vector<1x8x16xf32>,
    %146 = vector.extract_strided_slice %8 {offsets = [4, 0, 0], sizes = [1, 8, 16], strides = [1, 1, 1]} : vector<8x8x16xbf16> to vector<1x8x16xbf16>
    %147 = vector.shape_cast %146 : vector<1x8x16xbf16> to vector<8x16xbf16>
    %148 = arith.truncf %121 : vector<8x32xf32> to vector<8x32xbf16>
    %cst_70 = arith.constant dense<0.000000e+00> : vector<8x32xf32>
    %149 = tpu.matmul %147, %19, %cst_70 {dimension_numbers = #tpu.dot_dimension_numbers<[1], [0], [0], [1], [0, 0, 1, 1], [], []>} : vector<8x16xbf16>, vector<16x32xbf16>, vector<8x32xf32> -> vector<8x32xf32>
    %150 = arith.addf %13, %149 : vector<8x32xf32>
    %cst_71 = arith.constant dense<0.000000e+00> : vector<8x32xf32>
    %151 = tpu.matmul %148, %0, %cst_71 {dimension_numbers = #tpu.dot_dimension_numbers<[1], [0], [0], [1], [0, 0, 1, 1], [], []>} : vector<8x32xbf16>, vector<32x32xbf16>, vector<8x32xf32> -> vector<8x32xf32>
    %152 = arith.addf %150, %151 : vector<8x32xf32>
    %cst_72 = arith.constant dense<0.000000e+00> : vector<8x16xf32>
    %153 = tpu.matmul %147, %20, %cst_72 {dimension_numbers = #tpu.dot_dimension_numbers<[1], [0], [0], [1], [0, 0, 1, 1], [], []>} : vector<8x16xbf16>, vector<16x16xbf16>, vector<8x16xf32> -> vector<8x16xf32>
    %154 = arith.addf %18, %153 : vector<8x16xf32>
    %cst_73 = arith.constant dense<0.000000e+00> : vector<8x16xf32>
    %155 = tpu.matmul %148, %1, %cst_73 {dimension_numbers = #tpu.dot_dimension_numbers<[1], [0], [0], [1], [0, 0, 1, 1], [], []>} : vector<8x32xbf16>, vector<32x16xbf16>, vector<8x16xf32> -> vector<8x16xf32>
    %156 = arith.addf %154, %155 : vector<8x16xf32>
    %157 = arith.truncf %152 : vector<8x32xf32> to vector<8x32xbf16>
    %cst_74 = arith.constant dense<0.000000e+00> : vector<8x16xf32>
    %158 = tpu.matmul %157, %2, %cst_74 {dimension_numbers = #tpu.dot_dimension_numbers<[1], [0], [0], [1], [0, 0, 1, 1], [], []>} : vector<8x32xbf16>, vector<32x16xbf16>, vector<8x16xf32> -> vector<8x16xf32>
    %159 = arith.truncf %156 : vector<8x16xf32> to vector<8x16xbf16>
    %cst_75 = arith.constant dense<0.000000e+00> : vector<8x16xf32>
    %160 = tpu.matmul %159, %3, %cst_75 {dimension_numbers = #tpu.dot_dimension_numbers<[1], [0], [0], [1], [0, 0, 1, 1], [], []>} : vector<8x16xbf16>, vector<16x16xbf16>, vector<8x16xf32> -> vector<8x16xf32>
    %161 = arith.addf %158, %160 : vector<8x16xf32>
    %162 = vector.broadcast %4 : vector<1x16xf32> to vector<8x16xf32>
    %163 = arith.addf %161, %162 : vector<8x16xf32>
    %cst_76 = arith.constant dense<0xFF800000> : vector<8xf32>
    %164 = vector.multi_reduction <maximumf>, %163, %cst_76 [1] : vector<8x16xf32> to vector<8xf32>
    %165 = vector.shape_cast %164 : vector<8xf32> to vector<8x1xf32>
    %166 = vector.broadcast %165 : vector<8x1xf32> to vector<8x16xf32>
    %167 = arith.subf %163, %166 : vector<8x16xf32>
    %168 = math.exp %167 : vector<8x16xf32>
    %cst_77 = arith.constant dense<0.000000e+00> : vector<8xf32>
    %169 = vector.multi_reduction <add>, %168, %cst_77 [1] : vector<8x16xf32> to vector<8xf32>
    %170 = vector.shape_cast %169 : vector<8xf32> to vector<8x1xf32>
    %171 = math.log %170 : vector<8x1xf32>
    %172 = vector.broadcast %171 : vector<8x1xf32> to vector<8x16xf32>
    %173 = arith.subf %167, %172 : vector<8x16xf32>
    %c4 = arith.constant 4 : index
    %c0_78 = arith.constant 0 : index
    %c0_79 = arith.constant 0 : index
    %174 = vector.load %arg14[%c4, %c0_78, %c0_79] : memref<8x8x16xf32, #tpu.memory_space<vmem>>, vector<1x8x16xf32>
    %175 = vector.shape_cast %174 : vector<1x8x16xf32> to vector<8x16xf32>
    %176 = vector.shape_cast %173 : vector<8x16xf32> to vector<1x8x16xf32>
    tpu.vector_store %arg14[%c4, %c0_78, %c0_79], %176 {strides = array<i32>} : memref<8x8x16xf32, #tpu.memory_space<vmem>>, vector<1x8x16xf32>,
    %177 = vector.extract_strided_slice %8 {offsets = [5, 0, 0], sizes = [1, 8, 16], strides = [1, 1, 1]} : vector<8x8x16xbf16> to vector<1x8x16xbf16>
    %178 = vector.shape_cast %177 : vector<1x8x16xbf16> to vector<8x16xbf16>
    %179 = arith.truncf %152 : vector<8x32xf32> to vector<8x32xbf16>
    %cst_80 = arith.constant dense<0.000000e+00> : vector<8x32xf32>
    %180 = tpu.matmul %178, %19, %cst_80 {dimension_numbers = #tpu.dot_dimension_numbers<[1], [0], [0], [1], [0, 0, 1, 1], [], []>} : vector<8x16xbf16>, vector<16x32xbf16>, vector<8x32xf32> -> vector<8x32xf32>
    %181 = arith.addf %13, %180 : vector<8x32xf32>
    %cst_81 = arith.constant dense<0.000000e+00> : vector<8x32xf32>
    %182 = tpu.matmul %179, %0, %cst_81 {dimension_numbers = #tpu.dot_dimension_numbers<[1], [0], [0], [1], [0, 0, 1, 1], [], []>} : vector<8x32xbf16>, vector<32x32xbf16>, vector<8x32xf32> -> vector<8x32xf32>
    %183 = arith.addf %181, %182 : vector<8x32xf32>
    %cst_82 = arith.constant dense<0.000000e+00> : vector<8x16xf32>
    %184 = tpu.matmul %178, %20, %cst_82 {dimension_numbers = #tpu.dot_dimension_numbers<[1], [0], [0], [1], [0, 0, 1, 1], [], []>} : vector<8x16xbf16>, vector<16x16xbf16>, vector<8x16xf32> -> vector<8x16xf32>
    %185 = arith.addf %18, %184 : vector<8x16xf32>
    %cst_83 = arith.constant dense<0.000000e+00> : vector<8x16xf32>
    %186 = tpu.matmul %179, %1, %cst_83 {dimension_numbers = #tpu.dot_dimension_numbers<[1], [0], [0], [1], [0, 0, 1, 1], [], []>} : vector<8x32xbf16>, vector<32x16xbf16>, vector<8x16xf32> -> vector<8x16xf32>
    %187 = arith.addf %185, %186 : vector<8x16xf32>
    %188 = arith.truncf %183 : vector<8x32xf32> to vector<8x32xbf16>
    %cst_84 = arith.constant dense<0.000000e+00> : vector<8x16xf32>
    %189 = tpu.matmul %188, %2, %cst_84 {dimension_numbers = #tpu.dot_dimension_numbers<[1], [0], [0], [1], [0, 0, 1, 1], [], []>} : vector<8x32xbf16>, vector<32x16xbf16>, vector<8x16xf32> -> vector<8x16xf32>
    %190 = arith.truncf %187 : vector<8x16xf32> to vector<8x16xbf16>
    %cst_85 = arith.constant dense<0.000000e+00> : vector<8x16xf32>
    %191 = tpu.matmul %190, %3, %cst_85 {dimension_numbers = #tpu.dot_dimension_numbers<[1], [0], [0], [1], [0, 0, 1, 1], [], []>} : vector<8x16xbf16>, vector<16x16xbf16>, vector<8x16xf32> -> vector<8x16xf32>
    %192 = arith.addf %189, %191 : vector<8x16xf32>
    %193 = vector.broadcast %4 : vector<1x16xf32> to vector<8x16xf32>
    %194 = arith.addf %192, %193 : vector<8x16xf32>
    %cst_86 = arith.constant dense<0xFF800000> : vector<8xf32>
    %195 = vector.multi_reduction <maximumf>, %194, %cst_86 [1] : vector<8x16xf32> to vector<8xf32>
    %196 = vector.shape_cast %195 : vector<8xf32> to vector<8x1xf32>
    %197 = vector.broadcast %196 : vector<8x1xf32> to vector<8x16xf32>
    %198 = arith.subf %194, %197 : vector<8x16xf32>
    %199 = math.exp %198 : vector<8x16xf32>
    %cst_87 = arith.constant dense<0.000000e+00> : vector<8xf32>
    %200 = vector.multi_reduction <add>, %199, %cst_87 [1] : vector<8x16xf32> to vector<8xf32>
    %201 = vector.shape_cast %200 : vector<8xf32> to vector<8x1xf32>
    %202 = math.log %201 : vector<8x1xf32>
    %203 = vector.broadcast %202 : vector<8x1xf32> to vector<8x16xf32>
    %204 = arith.subf %198, %203 : vector<8x16xf32>
    %c5 = arith.constant 5 : index
    %c0_88 = arith.constant 0 : index
    %c0_89 = arith.constant 0 : index
    %205 = vector.load %arg14[%c5, %c0_88, %c0_89] : memref<8x8x16xf32, #tpu.memory_space<vmem>>, vector<1x8x16xf32>
    %206 = vector.shape_cast %205 : vector<1x8x16xf32> to vector<8x16xf32>
    %207 = vector.shape_cast %204 : vector<8x16xf32> to vector<1x8x16xf32>
    tpu.vector_store %arg14[%c5, %c0_88, %c0_89], %207 {strides = array<i32>} : memref<8x8x16xf32, #tpu.memory_space<vmem>>, vector<1x8x16xf32>,
    %208 = vector.extract_strided_slice %8 {offsets = [6, 0, 0], sizes = [1, 8, 16], strides = [1, 1, 1]} : vector<8x8x16xbf16> to vector<1x8x16xbf16>
    %209 = vector.shape_cast %208 : vector<1x8x16xbf16> to vector<8x16xbf16>
    %210 = arith.truncf %183 : vector<8x32xf32> to vector<8x32xbf16>
    %cst_90 = arith.constant dense<0.000000e+00> : vector<8x32xf32>
    %211 = tpu.matmul %209, %19, %cst_90 {dimension_numbers = #tpu.dot_dimension_numbers<[1], [0], [0], [1], [0, 0, 1, 1], [], []>} : vector<8x16xbf16>, vector<16x32xbf16>, vector<8x32xf32> -> vector<8x32xf32>
    %212 = arith.addf %13, %211 : vector<8x32xf32>
    %cst_91 = arith.constant dense<0.000000e+00> : vector<8x32xf32>
    %213 = tpu.matmul %210, %0, %cst_91 {dimension_numbers = #tpu.dot_dimension_numbers<[1], [0], [0], [1], [0, 0, 1, 1], [], []>} : vector<8x32xbf16>, vector<32x32xbf16>, vector<8x32xf32> -> vector<8x32xf32>
    %214 = arith.addf %212, %213 : vector<8x32xf32>
    %cst_92 = arith.constant dense<0.000000e+00> : vector<8x16xf32>
    %215 = tpu.matmul %209, %20, %cst_92 {dimension_numbers = #tpu.dot_dimension_numbers<[1], [0], [0], [1], [0, 0, 1, 1], [], []>} : vector<8x16xbf16>, vector<16x16xbf16>, vector<8x16xf32> -> vector<8x16xf32>
    %216 = arith.addf %18, %215 : vector<8x16xf32>
    %cst_93 = arith.constant dense<0.000000e+00> : vector<8x16xf32>
    %217 = tpu.matmul %210, %1, %cst_93 {dimension_numbers = #tpu.dot_dimension_numbers<[1], [0], [0], [1], [0, 0, 1, 1], [], []>} : vector<8x32xbf16>, vector<32x16xbf16>, vector<8x16xf32> -> vector<8x16xf32>
    %218 = arith.addf %216, %217 : vector<8x16xf32>
    %219 = arith.truncf %214 : vector<8x32xf32> to vector<8x32xbf16>
    %cst_94 = arith.constant dense<0.000000e+00> : vector<8x16xf32>
    %220 = tpu.matmul %219, %2, %cst_94 {dimension_numbers = #tpu.dot_dimension_numbers<[1], [0], [0], [1], [0, 0, 1, 1], [], []>} : vector<8x32xbf16>, vector<32x16xbf16>, vector<8x16xf32> -> vector<8x16xf32>
    %221 = arith.truncf %218 : vector<8x16xf32> to vector<8x16xbf16>
    %cst_95 = arith.constant dense<0.000000e+00> : vector<8x16xf32>
    %222 = tpu.matmul %221, %3, %cst_95 {dimension_numbers = #tpu.dot_dimension_numbers<[1], [0], [0], [1], [0, 0, 1, 1], [], []>} : vector<8x16xbf16>, vector<16x16xbf16>, vector<8x16xf32> -> vector<8x16xf32>
    %223 = arith.addf %220, %222 : vector<8x16xf32>
    %224 = vector.broadcast %4 : vector<1x16xf32> to vector<8x16xf32>
    %225 = arith.addf %223, %224 : vector<8x16xf32>
    %cst_96 = arith.constant dense<0xFF800000> : vector<8xf32>
    %226 = vector.multi_reduction <maximumf>, %225, %cst_96 [1] : vector<8x16xf32> to vector<8xf32>
    %227 = vector.shape_cast %226 : vector<8xf32> to vector<8x1xf32>
    %228 = vector.broadcast %227 : vector<8x1xf32> to vector<8x16xf32>
    %229 = arith.subf %225, %228 : vector<8x16xf32>
    %230 = math.exp %229 : vector<8x16xf32>
    %cst_97 = arith.constant dense<0.000000e+00> : vector<8xf32>
    %231 = vector.multi_reduction <add>, %230, %cst_97 [1] : vector<8x16xf32> to vector<8xf32>
    %232 = vector.shape_cast %231 : vector<8xf32> to vector<8x1xf32>
    %233 = math.log %232 : vector<8x1xf32>
    %234 = vector.broadcast %233 : vector<8x1xf32> to vector<8x16xf32>
    %235 = arith.subf %229, %234 : vector<8x16xf32>
    %c6 = arith.constant 6 : index
    %c0_98 = arith.constant 0 : index
    %c0_99 = arith.constant 0 : index
    %236 = vector.load %arg14[%c6, %c0_98, %c0_99] : memref<8x8x16xf32, #tpu.memory_space<vmem>>, vector<1x8x16xf32>
    %237 = vector.shape_cast %236 : vector<1x8x16xf32> to vector<8x16xf32>
    %238 = vector.shape_cast %235 : vector<8x16xf32> to vector<1x8x16xf32>
    tpu.vector_store %arg14[%c6, %c0_98, %c0_99], %238 {strides = array<i32>} : memref<8x8x16xf32, #tpu.memory_space<vmem>>, vector<1x8x16xf32>,
    %239 = vector.extract_strided_slice %8 {offsets = [7, 0, 0], sizes = [1, 8, 16], strides = [1, 1, 1]} : vector<8x8x16xbf16> to vector<1x8x16xbf16>
    %240 = vector.shape_cast %239 : vector<1x8x16xbf16> to vector<8x16xbf16>
    %241 = arith.truncf %214 : vector<8x32xf32> to vector<8x32xbf16>
    %cst_100 = arith.constant dense<0.000000e+00> : vector<8x32xf32>
    %242 = tpu.matmul %240, %19, %cst_100 {dimension_numbers = #tpu.dot_dimension_numbers<[1], [0], [0], [1], [0, 0, 1, 1], [], []>} : vector<8x16xbf16>, vector<16x32xbf16>, vector<8x32xf32> -> vector<8x32xf32>
    %243 = arith.addf %13, %242 : vector<8x32xf32>
    %cst_101 = arith.constant dense<0.000000e+00> : vector<8x32xf32>
    %244 = tpu.matmul %241, %0, %cst_101 {dimension_numbers = #tpu.dot_dimension_numbers<[1], [0], [0], [1], [0, 0, 1, 1], [], []>} : vector<8x32xbf16>, vector<32x32xbf16>, vector<8x32xf32> -> vector<8x32xf32>
    %245 = arith.addf %243, %244 : vector<8x32xf32>
    %cst_102 = arith.constant dense<0.000000e+00> : vector<8x16xf32>
    %246 = tpu.matmul %240, %20, %cst_102 {dimension_numbers = #tpu.dot_dimension_numbers<[1], [0], [0], [1], [0, 0, 1, 1], [], []>} : vector<8x16xbf16>, vector<16x16xbf16>, vector<8x16xf32> -> vector<8x16xf32>
    %247 = arith.addf %18, %246 : vector<8x16xf32>
    %cst_103 = arith.constant dense<0.000000e+00> : vector<8x16xf32>
    %248 = tpu.matmul %241, %1, %cst_103 {dimension_numbers = #tpu.dot_dimension_numbers<[1], [0], [0], [1], [0, 0, 1, 1], [], []>} : vector<8x32xbf16>, vector<32x16xbf16>, vector<8x16xf32> -> vector<8x16xf32>
    %249 = arith.addf %247, %248 : vector<8x16xf32>
    %250 = arith.truncf %245 : vector<8x32xf32> to vector<8x32xbf16>
    %cst_104 = arith.constant dense<0.000000e+00> : vector<8x16xf32>
    %251 = tpu.matmul %250, %2, %cst_104 {dimension_numbers = #tpu.dot_dimension_numbers<[1], [0], [0], [1], [0, 0, 1, 1], [], []>} : vector<8x32xbf16>, vector<32x16xbf16>, vector<8x16xf32> -> vector<8x16xf32>
    %252 = arith.truncf %249 : vector<8x16xf32> to vector<8x16xbf16>
    %cst_105 = arith.constant dense<0.000000e+00> : vector<8x16xf32>
    %253 = tpu.matmul %252, %3, %cst_105 {dimension_numbers = #tpu.dot_dimension_numbers<[1], [0], [0], [1], [0, 0, 1, 1], [], []>} : vector<8x16xbf16>, vector<16x16xbf16>, vector<8x16xf32> -> vector<8x16xf32>
    %254 = arith.addf %251, %253 : vector<8x16xf32>
    %255 = vector.broadcast %4 : vector<1x16xf32> to vector<8x16xf32>
    %256 = arith.addf %254, %255 : vector<8x16xf32>
    %cst_106 = arith.constant dense<0xFF800000> : vector<8xf32>
    %257 = vector.multi_reduction <maximumf>, %256, %cst_106 [1] : vector<8x16xf32> to vector<8xf32>
    %258 = vector.shape_cast %257 : vector<8xf32> to vector<8x1xf32>
    %259 = vector.broadcast %258 : vector<8x1xf32> to vector<8x16xf32>
    %260 = arith.subf %256, %259 : vector<8x16xf32>
    %261 = math.exp %260 : vector<8x16xf32>
    %cst_107 = arith.constant dense<0.000000e+00> : vector<8xf32>
    %262 = vector.multi_reduction <add>, %261, %cst_107 [1] : vector<8x16xf32> to vector<8xf32>
    %263 = vector.shape_cast %262 : vector<8xf32> to vector<8x1xf32>
    %264 = math.log %263 : vector<8x1xf32>
    %265 = vector.broadcast %264 : vector<8x1xf32> to vector<8x16xf32>
    %266 = arith.subf %260, %265 : vector<8x16xf32>
    %c7 = arith.constant 7 : index
    %c0_108 = arith.constant 0 : index
    %c0_109 = arith.constant 0 : index
    %267 = vector.load %arg14[%c7, %c0_108, %c0_109] : memref<8x8x16xf32, #tpu.memory_space<vmem>>, vector<1x8x16xf32>
    %268 = vector.shape_cast %267 : vector<1x8x16xf32> to vector<8x16xf32>
    %269 = vector.shape_cast %266 : vector<8x16xf32> to vector<1x8x16xf32>
    tpu.vector_store %arg14[%c7, %c0_108, %c0_109], %269 {strides = array<i32>} : memref<8x8x16xf32, #tpu.memory_space<vmem>>, vector<1x8x16xf32>,
    %c0_110 = arith.constant 0 : index
    %c0_111 = arith.constant 0 : index
    %270 = vector.load %arg15[%c0_110, %c0_111] : memref<8x32xf32, #tpu.memory_space<vmem>>, vector<8x32xf32>
    tpu.vector_store %arg15[%c0_110, %c0_111], %245 {strides = array<i32>} : memref<8x32xf32, #tpu.memory_space<vmem>>, vector<8x32xf32>,
    return
  }
}

</mosaic_0001>

<llo_original>
// kernel: tpu_custom_call.1
$region0: #{tpu_custom_call.1}
  #allocation0 [shape = 'u32[]', space=smem, size = 0x4, offset = 0x4, fixed_abs, tag = 'smem constant byte address 0x4 - core index']
  #allocation1 [shape = 'u32[72,128]{1,0:T(1,128)}', space=vmem, size = 0x9000, scoped, tag = 'internal scratch']
  %s0 = inlined_call_operand.vmem [shape: f32[8,4], index: 0, kind: input, shape index: {}]
  %s1 = inlined_call_operand.hbm [shape: f32[8,8,16], index: 1, kind: input, shape index: {}]
  %s2 = inlined_call_operand.vmem [shape: f32[8,32], index: 2, kind: input, shape index: {}]
  %s3 = inlined_call_operand.hbm [shape: bf16[4,32], index: 3, kind: input, shape index: {}]
  %s4 = inlined_call_operand.vmem [shape: bf16[16,32], index: 4, kind: input, shape index: {}]
  %s5 = inlined_call_operand.vmem [shape: bf16[32,32], index: 5, kind: input, shape index: {}]
  %s6 = inlined_call_operand.hbm [shape: bf16[4,16], index: 6, kind: input, shape index: {}]
  %s7 = inlined_call_operand.vmem [shape: bf16[16,16], index: 7, kind: input, shape index: {}]
  %s8 = inlined_call_operand.vmem [shape: bf16[32,16], index: 8, kind: input, shape index: {}]
  %s9 = inlined_call_operand.vmem [shape: bf16[32,16], index: 9, kind: input, shape index: {}]
  %s10 = inlined_call_operand.vmem [shape: bf16[16,16], index: 10, kind: input, shape index: {}]
  %s11 = inlined_call_operand.vmem [shape: f32[1,32], index: 11, kind: input, shape index: {}]
  %s12 = inlined_call_operand.vmem [shape: f32[1,16], index: 12, kind: input, shape index: {}]
  %s13 = inlined_call_operand.vmem [shape: f32[1,16], index: 13, kind: input, shape index: {}]
  %s14 = inlined_call_operand.hbm [shape: f32[8,8,16], index: 14, kind: output, shape index: {0}]
  %s15 = inlined_call_operand.hbm [shape: f32[8,32], index: 15, kind: output, shape index: {1}]
  %16 = xla_tuple %s14, %s15
  %s17 = sld [smem:[#allocation0]]
  $region86: #{tpu_custom_call.1} parent=0
    _
  %s19 = ssub.s32 1, %s17
  %s20 = scalar_select 0, %s19, %s17
  $region1: #{tpu_custom_call.1} parent=0
    #allocation2 [shape = 'u8[32768]{0}', space=vmem, size = 0x8000, scoped, tag = 'input window, operand 1, single buffered']
    #allocation3 [shape = 's32[1]{0}', space=sflag, size = 0x4, scoped, tag = 'scoped memory for tpu_custom_call.1']
    #allocation4 [shape = 's32[1]{0}', space=sflag, size = 0x4, scoped, tag = 'scoped memory for tpu_custom_call.1']
    #allocation5 [shape = 'u8[1024]{0}', space=vmem, size = 0x400, scoped, tag = 'input window, operand 3, single buffered']
    #allocation6 [shape = 's32[1]{0}', space=sflag, size = 0x4, scoped, tag = 'scoped memory for tpu_custom_call.1']
    #allocation7 [shape = 'u8[1024]{0}', space=vmem, size = 0x400, scoped, tag = 'input window, operand 6, single buffered']
    #allocation8 [shape = 'u8[32768]{0}', space=vmem, size = 0x8000, scoped, tag = 'output window, operand 0, single buffered']
    #allocation9 [shape = 'u8[4096]{0}', space=vmem, size = 0x1000, scoped, tag = 'output window, operand 1, single buffered']
    #allocation10 [shape = 's32[1]{0}', space=sflag, size = 0x4, scoped, tag = 'scoped memory for tpu_custom_call.1']
    %21 = vsyncpa [#allocation3], 0
    %22 = vsyncpa [#allocation6], 0
    %23 = vsyncpa [#allocation4], 0
    %24 = vsyncpa [#allocation10], 0
    // Predicated region
    $region2: #{tpu_custom_call.1} parent=1 // pred_check
      _
    $region3: #{tpu_custom_call.1} parent=1 // pred_check_branch
      %26 = sbr.rel (0) target = $region5
    $region4: #{tpu_custom_call.1} parent=1 // pred_region
      _
    $region5: #{tpu_custom_call.1} parent=1 // pred_fallthru
      _
    // Predicated region
    $region6: #{tpu_custom_call.1} parent=1 // pred_check
      _
    $region7: #{tpu_custom_call.1} parent=1 // pred_check_branch
      %28 = sbr.rel (0) target = $region9
    $region8: #{tpu_custom_call.1} parent=1 // pred_region
      %30 = vsyncadd [#allocation3], 0
      %s31 = sshll.u32 %s1, 4
      %s32 = int_to_ptr.hbm [resolvable:$true] %s31
      %s33 = sshll.u32 [#allocation2], 4
      %s34 = int_to_ptr.vmem [resolvable:$true] %s33
      %39 = dma.hbm_to_vmem [thread:$0]  %s32, 1024, %s34, [#allocation3], 128, 128, 8
    $region9: #{tpu_custom_call.1} parent=1 // pred_fallthru
      _
    // Predicated region
    $region10: #{tpu_custom_call.1} parent=1 // pred_check
      _
    $region11: #{tpu_custom_call.1} parent=1 // pred_check_branch
      %41 = sbr.rel (0) target = $region13
    $region12: #{tpu_custom_call.1} parent=1 // pred_region
      _
    $region13: #{tpu_custom_call.1} parent=1 // pred_fallthru
      _
    // Predicated region
    $region14: #{tpu_custom_call.1} parent=1 // pred_check
      _
    $region15: #{tpu_custom_call.1} parent=1 // pred_check_branch
      %43 = sbr.rel (0) target = $region17
    $region16: #{tpu_custom_call.1} parent=1 // pred_region
      %45 = vsyncadd [#allocation6], 0
      %s47 = sshll.u32 %s3, 4
      %s48 = int_to_ptr.hbm [resolvable:$true] %s47
      %s49 = sshll.u32 [#allocation5], 4
      %s50 = int_to_ptr.vmem [resolvable:$true] %s49
      %52 = dma.hbm_to_vmem [thread:$0]  %s48, 32, %s50, [#allocation6]
    $region17: #{tpu_custom_call.1} parent=1 // pred_fallthru
      _
    // Predicated region
    $region18: #{tpu_custom_call.1} parent=1 // pred_check
      _
    $region19: #{tpu_custom_call.1} parent=1 // pred_check_branch
      %54 = sbr.rel (0) target = $region21
    $region20: #{tpu_custom_call.1} parent=1 // pred_region
      _
    $region21: #{tpu_custom_call.1} parent=1 // pred_fallthru
      _
    // Predicated region
    $region22: #{tpu_custom_call.1} parent=1 // pred_check
      _
    $region23: #{tpu_custom_call.1} parent=1 // pred_check_branch
      %56 = sbr.rel (0) target = $region25
    $region24: #{tpu_custom_call.1} parent=1 // pred_region
      _
    $region25: #{tpu_custom_call.1} parent=1 // pred_fallthru
      _
    // Predicated region
    $region26: #{tpu_custom_call.1} parent=1 // pred_check
      _
    $region27: #{tpu_custom_call.1} parent=1 // pred_check_branch
      %58 = sbr.rel (0) target = $region29
    $region28: #{tpu_custom_call.1} parent=1 // pred_region
      %60 = vsyncadd [#allocation6], 0
      %s62 = sshll.u32 %s6, 4
      %s63 = int_to_ptr.hbm [resolvable:$true] %s62
      %s64 = sshll.u32 [#allocation7], 4
      %s65 = int_to_ptr.vmem [resolvable:$true] %s64
      %67 = dma.hbm_to_vmem [thread:$0]  %s63, 32, %s65, [#allocation6]
    $region29: #{tpu_custom_call.1} parent=1 // pred_fallthru
      _
    // Predicated region
    $region30: #{tpu_custom_call.1} parent=1 // pred_check
      _
    $region31: #{tpu_custom_call.1} parent=1 // pred_check_branch
      %69 = sbr.rel (0) target = $region33
    $region32: #{tpu_custom_call.1} parent=1 // pred_region
      _
    $region33: #{tpu_custom_call.1} parent=1 // pred_fallthru
      _
    // Predicated region
    $region34: #{tpu_custom_call.1} parent=1 // pred_check
      _
    $region35: #{tpu_custom_call.1} parent=1 // pred_check_branch
      %71 = sbr.rel (0) target = $region37
    $region36: #{tpu_custom_call.1} parent=1 // pred_region
      _
    $region37: #{tpu_custom_call.1} parent=1 // pred_fallthru
      _
    // Predicated region
    $region38: #{tpu_custom_call.1} parent=1 // pred_check
      _
    $region39: #{tpu_custom_call.1} parent=1 // pred_check_branch
      %73 = sbr.rel (0) target = $region41
    $region40: #{tpu_custom_call.1} parent=1 // pred_region
      _
    $region41: #{tpu_custom_call.1} parent=1 // pred_fallthru
      _
    // Predicated region
    $region42: #{tpu_custom_call.1} parent=1 // pred_check
      _
    $region43: #{tpu_custom_call.1} parent=1 // pred_check_branch
      %75 = sbr.rel (0) target = $region45
    $region44: #{tpu_custom_call.1} parent=1 // pred_region
      _
    $region45: #{tpu_custom_call.1} parent=1 // pred_fallthru
      _
    // Predicated region
    $region46: #{tpu_custom_call.1} parent=1 // pred_check
      _
    $region47: #{tpu_custom_call.1} parent=1 // pred_check_branch
      %77 = sbr.rel (0) target = $region49
    $region48: #{tpu_custom_call.1} parent=1 // pred_region
      _
    $region49: #{tpu_custom_call.1} parent=1 // pred_fallthru
      _
    // Predicated region
    $region50: #{tpu_custom_call.1} parent=1 // pred_check
      _
    $region51: #{tpu_custom_call.1} parent=1 // pred_check_branch
      %79 = sbr.rel (0) target = $region53
    $region52: #{tpu_custom_call.1} parent=1 // pred_region
      _
    $region53: #{tpu_custom_call.1} parent=1 // pred_fallthru
      _
    // Predicated region
    $region54: #{tpu_custom_call.1} parent=1 // pred_check
      _
    $region55: #{tpu_custom_call.1} parent=1 // pred_check_branch
      %81 = sbr.rel (0) target = $region57
    $region56: #{tpu_custom_call.1} parent=1 // pred_region
      _
    $region57: #{tpu_custom_call.1} parent=1 // pred_fallthru
      _
    // Predicated region
    $region58: #{tpu_custom_call.1} parent=1 // pred_check
      _
    $region59: #{tpu_custom_call.1} parent=1 // pred_check_branch
      %83 = sbr.rel (0) target = $region61
    $region60: #{tpu_custom_call.1} parent=1 // pred_region
      %85 = dma.done [#allocation3], 1024
    $region61: #{tpu_custom_call.1} parent=1 // pred_fallthru
      _
    // Predicated region
    $region62: #{tpu_custom_call.1} parent=1 // pred_check
      _
    $region63: #{tpu_custom_call.1} parent=1 // pred_check_branch
      %87 = sbr.rel (0) target = $region65
    $region64: #{tpu_custom_call.1} parent=1 // pred_region
      %89 = dma.done [#allocation6], 32
    $region65: #{tpu_custom_call.1} parent=1 // pred_fallthru
      _
    // Predicated region
    $region66: #{tpu_custom_call.1} parent=1 // pred_check
      _
    $region67: #{tpu_custom_call.1} parent=1 // pred_check_branch
      %91 = sbr.rel (0) target = $region69
    $region68: #{tpu_custom_call.1} parent=1 // pred_region
      %93 = dma.done [#allocation6], 32
    $region69: #{tpu_custom_call.1} parent=1 // pred_fallthru
      _
    %v95 = vld [vmem:[%s5] sm:$0xf]
    %v96 = vld [vmem:[%s5 + $0x4] sm:$0xf]
    %v97 = vld [vmem:[%s5 + $0x8] sm:$0xf]
    %v98 = vld [vmem:[%s5 + $0xc] sm:$0xf]
    %v99 = vld [vmem:[%s8] sm:$0xf]
    %v100 = vld [vmem:[%s8 + $0x4] sm:$0xf]
    %v101 = vld [vmem:[%s8 + $0x8] sm:$0xf]
    %v102 = vld [vmem:[%s8 + $0xc] sm:$0xf]
    %v103 = vld [vmem:[%s9] sm:$0xf]
    %v104 = vld [vmem:[%s9 + $0x4] sm:$0xf]
    %v105 = vld [vmem:[%s9 + $0x8] sm:$0xf]
    %v106 = vld [vmem:[%s9 + $0xc] sm:$0xf]
    %v107 = vld [vmem:[%s10] sm:$0xf]
    %v108 = vld [vmem:[%s10 + $0x4] sm:$0xf]
    %v109 = vld [vmem:[%s13] sm:$0x1]
    %v110 = vld [vmem:[%s0] sm:$0xff]
    %v111 = vpack.c.bf16 %v110, %v110
    %v112 = vld [vmem:[#allocation2] sm:$0xff]
    %v113 = vld [vmem:[#allocation2 + $0x8] sm:$0xff]
    %v114 = vld [vmem:[#allocation2 + $0x10] sm:$0xff]
    %v115 = vld [vmem:[#allocation2 + $0x18] sm:$0xff]
    %v116 = vld [vmem:[#allocation2 + $0x20] sm:$0xff]
    %v117 = vld [vmem:[#allocation2 + $0x28] sm:$0xff]
    %v118 = vld [vmem:[#allocation2 + $0x30] sm:$0xff]
    %v119 = vld [vmem:[#allocation2 + $0x38] sm:$0xff]
    %v120 = vpack.c.bf16 %v112, %v112
    %v121 = vpack.c.bf16 %v113, %v113
    %v122 = vpack.c.bf16 %v114, %v114
    %v123 = vpack.c.bf16 %v115, %v115
    %v124 = vpack.c.bf16 %v116, %v116
    %v125 = vpack.c.bf16 %v117, %v117
    %v126 = vpack.c.bf16 %v118, %v118
    %v127 = vpack.c.bf16 %v119, %v119
    %v128 = vld [vmem:[#allocation5] sm:$0x3]
    %v129 = vld [vmem:[%s11] sm:$0x1]
    %v131 = vperm.slane %v129, 0
    %vm133 = vcmask 31744
    %v135 = vsel %vm133, %v111, 0
    %vm137 = vcmask 1041408
    %v139 = vsel %vm137, %v128, 0
    %141 = vmatpush.bf16.msra.mxu0 0
    %142 = vmatpush.bf16.msra.mxu0 0
    %143 = vmatpush.bf16.msra.mxu0 0
    %144 = vmatpush.bf16.msra.mxu0 0
    %145 = vmatpush.bf16.msra.mxu0 0
    %146 = vmatpush.bf16.msra.mxu0 0
    %147 = vmatpush.bf16.msra.mxu0 0
    %148 = vmatpush.bf16.msra.mxu0 %v139
    %149 = vmatmul.bf16.gmra.mxu0 %v135
    %v150 = vpop.f32.mrf.mxu0
    %v151 = vadd.f32 %v131, %v150
    %v152 = vpop.f32.mrf.mxu0
    %153 = vdwg.mxu0
    %v154 = vld [vmem:[#allocation7] sm:$0x3]
    %v155 = vld [vmem:[%s12] sm:$0x1]
    %v157 = vperm.slane %v155, 0
    %v160 = vsel %vm137, %v154, 0
    %162 = vmatpush.bf16.msra.mxu0 0
    %163 = vmatpush.bf16.msra.mxu0 0
    %164 = vmatpush.bf16.msra.mxu0 0
    %165 = vmatpush.bf16.msra.mxu0 0
    %166 = vmatpush.bf16.msra.mxu0 0
    %167 = vmatpush.bf16.msra.mxu0 0
    %168 = vmatpush.bf16.msra.mxu0 0
    %169 = vmatpush.bf16.msra.mxu0 %v160
    %170 = vmatmul.bf16.gmra.mxu0 %v135
    %v171 = vpop.f32.mrf.mxu0
    %v172 = vadd.f32 %v157, %v171
    %v173 = vpop.f32.mrf.mxu0
    %174 = vdwg.mxu0
    %v175 = vld [vmem:[%s4] sm:$0xf]
    %v176 = vld [vmem:[%s4 + $0x4] sm:$0xf]
    %v177 = vld [vmem:[%s7] sm:$0xf]
    %v178 = vld [vmem:[%s7 + $0x4] sm:$0xf]
    %v179 = vld [vmem:[%s2] sm:$0xff]
    %v180 = vpack.c.bf16 %v179, %v179
    %v183 = vunpack.c.l.b16 %v175
    %v184 = vunpack.c.l.b16 %v176
    %v185 = vpack.c.b16 %v184, %v183
    %vm187 = vcmask 130048
    %v189 = vsel %vm187, %v120, 0
    %191 = vmatpush.bf16.msra.mxu0 0
    %192 = vmatpush.bf16.msra.mxu0 0
    %193 = vmatpush.bf16.msra.mxu0 0
    %194 = vmatpush.bf16.msra.mxu0 0
    %195 = vmatpush.bf16.msra.mxu0 0
    %196 = vmatpush.bf16.msra.mxu0 0
    %197 = vmatpush.bf16.msra.mxu0 0
    %198 = vmatpush.bf16.msra.mxu0 %v185
    %199 = vmatmul.bf16.gmra.mxu0 %v189
    %v200 = vpop.f32.mrf.mxu0
    %v201 = vadd.f32 0.0, %v200
    %v202 = vpop.f32.mrf.mxu0
    %203 = vdwg.mxu0
    %v204 = vadd.f32 %v151, %v201
    %v209 = vunpack.c.l.b16 %v95
    %v210 = vunpack.c.l.b16 %v96
    %v211 = vunpack.c.l.b16 %v97
    %v212 = vunpack.c.l.b16 %v98
    %v213 = vpack.c.b16 %v210, %v209
    %v214 = vpack.c.b16 %v212, %v211
    %vm217 = vcmask 261120
    %v219 = vsel %vm217, %v180, 0
    %221 = vmatpush.bf16.msra.mxu0 0
    %222 = vmatpush.bf16.msra.mxu0 0
    %223 = vmatpush.bf16.msra.mxu0 0
    %224 = vmatpush.bf16.msra.mxu0 0
    %225 = vmatpush.bf16.msra.mxu0 0
    %226 = vmatpush.bf16.msra.mxu0 0
    %227 = vmatpush.bf16.msra.mxu0 %v214
    %228 = vmatpush.bf16.msra.mxu0 %v213
    %229 = vmatmul.bf16.gmra.mxu0 %v219
    %v230 = vpop.f32.mrf.mxu0
    %v231 = vadd.f32 0.0, %v230
    %v232 = vpop.f32.mrf.mxu0
    %233 = vdwg.mxu0
    %v234 = vadd.f32 %v204, %v231
    %v237 = vunpack.c.l.b16 %v177
    %v238 = vunpack.c.l.b16 %v178
    %v239 = vpack.c.b16 %v238, %v237
    %241 = vmatpush.bf16.msra.mxu0 0
    %242 = vmatpush.bf16.msra.mxu0 0
    %243 = vmatpush.bf16.msra.mxu0 0
    %244 = vmatpush.bf16.msra.mxu0 0
    %245 = vmatpush.bf16.msra.mxu0 0
    %246 = vmatpush.bf16.msra.mxu0 0
    %247 = vmatpush.bf16.msra.mxu0 0
    %248 = vmatpush.bf16.msra.mxu0 %v239
    %249 = vmatmul.bf16.gmra.mxu0 %v189
    %v250 = vpop.f32.mrf.mxu0
    %v251 = vadd.f32 0.0, %v250
    %v252 = vpop.f32.mrf.mxu0
    %253 = vdwg.mxu0
    %v254 = vadd.f32 %v172, %v251
    %v259 = vunpack.c.l.b16 %v99
    %v260 = vunpack.c.l.b16 %v100
    %v261 = vunpack.c.l.b16 %v101
    %v262 = vunpack.c.l.b16 %v102
    %v263 = vpack.c.b16 %v260, %v259
    %v264 = vpack.c.b16 %v262, %v261
    %267 = vmatpush.bf16.msra.mxu0 0
    %268 = vmatpush.bf16.msra.mxu0 0
    %269 = vmatpush.bf16.msra.mxu0 0
    %270 = vmatpush.bf16.msra.mxu0 0
    %271 = vmatpush.bf16.msra.mxu0 0
    %272 = vmatpush.bf16.msra.mxu0 0
    %273 = vmatpush.bf16.msra.mxu0 %v264
    %274 = vmatpush.bf16.msra.mxu0 %v263
    %275 = vmatmul.bf16.gmra.mxu0 %v219
    %v276 = vpop.f32.mrf.mxu0
    %v277 = vadd.f32 0.0, %v276
    %v278 = vpop.f32.mrf.mxu0
    %279 = vdwg.mxu0
    %v280 = vadd.f32 %v254, %v277
    %v281 = vpack.c.bf16 %v234, %v234
    %v282 = vpack.c.bf16 %v280, %v280
    %v285 = vunpack.c.l.b16 %v107
    %v286 = vunpack.c.l.b16 %v108
    %v287 = vpack.c.b16 %v286, %v285
    %v290 = vsel %vm187, %v282, 0
    %292 = vmatpush.bf16.msra.mxu0 0
    %293 = vmatpush.bf16.msra.mxu0 0
    %294 = vmatpush.bf16.msra.mxu0 0
    %295 = vmatpush.bf16.msra.mxu0 0
    %296 = vmatpush.bf16.msra.mxu0 0
    %297 = vmatpush.bf16.msra.mxu0 0
    %298 = vmatpush.bf16.msra.mxu0 0
    %299 = vmatpush.bf16.msra.mxu0 %v287
    %300 = vmatmul.bf16.gmra.mxu0 %v290
    %v301 = vpop.f32.mrf.mxu0
    %v302 = vadd.f32 0.0, %v301
    %v303 = vpop.f32.mrf.mxu0
    %304 = vdwg.mxu0
    %v309 = vunpack.c.l.b16 %v103
    %v310 = vunpack.c.l.b16 %v104
    %v311 = vunpack.c.l.b16 %v105
    %v312 = vunpack.c.l.b16 %v106
    %v313 = vpack.c.b16 %v310, %v309
    %v314 = vpack.c.b16 %v312, %v311
    %v318 = vsel %vm217, %v281, 0
    %320 = vmatpush.bf16.msra.mxu0 0
    %321 = vmatpush.bf16.msra.mxu0 0
    %322 = vmatpush.bf16.msra.mxu0 0
    %323 = vmatpush.bf16.msra.mxu0 0
    %324 = vmatpush.bf16.msra.mxu0 0
    %325 = vmatpush.bf16.msra.mxu0 0
    %326 = vmatpush.bf16.msra.mxu0 %v314
    %327 = vmatpush.bf16.msra.mxu0 %v313
    %328 = vmatmul.bf16.gmra.mxu0 %v318
    %v329 = vpop.f32.mrf.mxu0
    %v330 = vadd.f32 %v302, %v329
    %v331 = vpop.f32.mrf.mxu0
    %332 = vdwg.mxu0
    %v334 = vperm.slane %v109, 0
    %v336 = vadd.f32 %v330, %v334
    %v337 = vsel %vm187, %v336, -inf
    %338 = vmax.xlane.f32.xlu0 %v337
    %v339 = vpop.xlane.xlu0 %338
    %v340 = vsub.f32 %v336, %v339
    %v341 = vmul.f32 %v340, 1.442695
    %v342 = vpow.pop %v341
    %v343 = vsel %vm187, %v342, 0.0
    %344 = vadd.xlane.f32.xlu0 %v343
    %v345 = vpop.xlane.xlu0 %344
    %v346 = vlog2.pop %v345
    %v347 = vmul.f32 %v346, 0.6931472
    %v348 = vsub.f32 %v340, %v347
    %349 = vst.msk [vmem:[#allocation8] sm:$0xff] %vm187, %v348
    %v351 = vsel %vm187, %v121, 0
    %353 = vmatpush.bf16.msra.mxu0 0
    %354 = vmatpush.bf16.msra.mxu0 0
    %355 = vmatpush.bf16.msra.mxu0 0
    %356 = vmatpush.bf16.msra.mxu0 0
    %357 = vmatpush.bf16.msra.mxu0 0
    %358 = vmatpush.bf16.msra.mxu0 0
    %359 = vmatpush.bf16.msra.mxu0 0
    %360 = vmatpush.bf16.msra.mxu0 %v185
    %361 = vmatmul.bf16.gmra.mxu0 %v351
    %v362 = vpop.f32.mrf.mxu0
    %v363 = vadd.f32 0.0, %v362
    %v364 = vpop.f32.mrf.mxu0
    %365 = vdwg.mxu0
    %v366 = vadd.f32 %v151, %v363
    %367 = vmatpush.bf16.msra.mxu0 0
    %368 = vmatpush.bf16.msra.mxu0 0
    %369 = vmatpush.bf16.msra.mxu0 0
    %370 = vmatpush.bf16.msra.mxu0 0
    %371 = vmatpush.bf16.msra.mxu0 0
    %372 = vmatpush.bf16.msra.mxu0 0
    %373 = vmatpush.bf16.msra.mxu0 %v214
    %374 = vmatpush.bf16.msra.mxu0 %v213
    %375 = vmatmul.bf16.gmra.mxu0 %v318
    %v376 = vpop.f32.mrf.mxu0
    %v377 = vadd.f32 0.0, %v376
    %v378 = vpop.f32.mrf.mxu0
    %379 = vdwg.mxu0
    %v380 = vadd.f32 %v366, %v377
    %381 = vmatpush.bf16.msra.mxu0 0
    %382 = vmatpush.bf16.msra.mxu0 0
    %383 = vmatpush.bf16.msra.mxu0 0
    %384 = vmatpush.bf16.msra.mxu0 0
    %385 = vmatpush.bf16.msra.mxu0 0
    %386 = vmatpush.bf16.msra.mxu0 0
    %387 = vmatpush.bf16.msra.mxu0 0
    %388 = vmatpush.bf16.msra.mxu0 %v239
    %389 = vmatmul.bf16.gmra.mxu0 %v351
    %v390 = vpop.f32.mrf.mxu0
    %v391 = vadd.f32 0.0, %v390
    %v392 = vpop.f32.mrf.mxu0
    %393 = vdwg.mxu0
    %v394 = vadd.f32 %v172, %v391
    %395 = vmatpush.bf16.msra.mxu0 0
    %396 = vmatpush.bf16.msra.mxu0 0
    %397 = vmatpush.bf16.msra.mxu0 0
    %398 = vmatpush.bf16.msra.mxu0 0
    %399 = vmatpush.bf16.msra.mxu0 0
    %400 = vmatpush.bf16.msra.mxu0 0
    %401 = vmatpush.bf16.msra.mxu0 %v264
    %402 = vmatpush.bf16.msra.mxu0 %v263
    %403 = vmatmul.bf16.gmra.mxu0 %v318
    %v404 = vpop.f32.mrf.mxu0
    %v405 = vadd.f32 0.0, %v404
    %v406 = vpop.f32.mrf.mxu0
    %407 = vdwg.mxu0
    %v408 = vadd.f32 %v394, %v405
    %v409 = vpack.c.bf16 %v380, %v380
    %v410 = vpack.c.bf16 %v408, %v408
    %v412 = vsel %vm187, %v410, 0
    %414 = vmatpush.bf16.msra.mxu0 0
    %415 = vmatpush.bf16.msra.mxu0 0
    %416 = vmatpush.bf16.msra.mxu0 0
    %417 = vmatpush.bf16.msra.mxu0 0
    %418 = vmatpush.bf16.msra.mxu0 0
    %419 = vmatpush.bf16.msra.mxu0 0
    %420 = vmatpush.bf16.msra.mxu0 0
    %421 = vmatpush.bf16.msra.mxu0 %v287
    %422 = vmatmul.bf16.gmra.mxu0 %v412
    %v423 = vpop.f32.mrf.mxu0
    %v424 = vadd.f32 0.0, %v423
    %v425 = vpop.f32.mrf.mxu0
    %426 = vdwg.mxu0
    %v428 = vsel %vm217, %v409, 0
    %430 = vmatpush.bf16.msra.mxu0 0
    %431 = vmatpush.bf16.msra.mxu0 0
    %432 = vmatpush.bf16.msra.mxu0 0
    %433 = vmatpush.bf16.msra.mxu0 0
    %434 = vmatpush.bf16.msra.mxu0 0
    %435 = vmatpush.bf16.msra.mxu0 0
    %436 = vmatpush.bf16.msra.mxu0 %v314
    %437 = vmatpush.bf16.msra.mxu0 %v313
    %438 = vmatmul.bf16.gmra.mxu0 %v428
    %v439 = vpop.f32.mrf.mxu0
    %v440 = vadd.f32 %v424, %v439
    %v441 = vpop.f32.mrf.mxu0
    %442 = vdwg.mxu0
    %v443 = vadd.f32 %v440, %v334
    %v444 = vsel %vm187, %v443, -inf
    %445 = vmax.xlane.f32.xlu0 %v444
    %v446 = vpop.xlane.xlu0 %445
    %v447 = vsub.f32 %v443, %v446
    %v448 = vmul.f32 %v447, 1.442695
    %v449 = vpow.pop %v448
    %v450 = vsel %vm187, %v449, 0.0
    %451 = vadd.xlane.f32.xlu0 %v450
    %v452 = vpop.xlane.xlu0 %451
    %v453 = vlog2.pop %v452
    %v454 = vmul.f32 %v453, 0.6931472
    %v455 = vsub.f32 %v447, %v454
    %s456 = scalar_lea.vmem [#allocation8], 8
    %457 = vst.msk [vmem:[%s456] sm:$0xff] %vm187, %v455
    %v459 = vsel %vm187, %v122, 0
    %461 = vmatpush.bf16.msra.mxu0 0
    %462 = vmatpush.bf16.msra.mxu0 0
    %463 = vmatpush.bf16.msra.mxu0 0
    %464 = vmatpush.bf16.msra.mxu0 0
    %465 = vmatpush.bf16.msra.mxu0 0
    %466 = vmatpush.bf16.msra.mxu0 0
    %467 = vmatpush.bf16.msra.mxu0 0
    %468 = vmatpush.bf16.msra.mxu0 %v185
    %469 = vmatmul.bf16.gmra.mxu0 %v459
    %v470 = vpop.f32.mrf.mxu0
    %v471 = vadd.f32 0.0, %v470
    %v472 = vpop.f32.mrf.mxu0
    %473 = vdwg.mxu0
    %v474 = vadd.f32 %v151, %v471
    %475 = vmatpush.bf16.msra.mxu0 0
    %476 = vmatpush.bf16.msra.mxu0 0
    %477 = vmatpush.bf16.msra.mxu0 0
    %478 = vmatpush.bf16.msra.mxu0 0
    %479 = vmatpush.bf16.msra.mxu0 0
    %480 = vmatpush.bf16.msra.mxu0 0
    %481 = vmatpush.bf16.msra.mxu0 %v214
    %482 = vmatpush.bf16.msra.mxu0 %v213
    %483 = vmatmul.bf16.gmra.mxu0 %v428
    %v484 = vpop.f32.mrf.mxu0
    %v485 = vadd.f32 0.0, %v484
    %v486 = vpop.f32.mrf.mxu0
    %487 = vdwg.mxu0
    %v488 = vadd.f32 %v474, %v485
    %489 = vmatpush.bf16.msra.mxu0 0
    %490 = vmatpush.bf16.msra.mxu0 0
    %491 = vmatpush.bf16.msra.mxu0 0
    %492 = vmatpush.bf16.msra.mxu0 0
    %493 = vmatpush.bf16.msra.mxu0 0
    %494 = vmatpush.bf16.msra.mxu0 0
    %495 = vmatpush.bf16.msra.mxu0 0
    %496 = vmatpush.bf16.msra.mxu0 %v239
    %497 = vmatmul.bf16.gmra.mxu0 %v459
    %v498 = vpop.f32.mrf.mxu0
    %v499 = vadd.f32 0.0, %v498
    %v500 = vpop.f32.mrf.mxu0
    %501 = vdwg.mxu0
    %v502 = vadd.f32 %v172, %v499
    %503 = vmatpush.bf16.msra.mxu0 0
    %504 = vmatpush.bf16.msra.mxu0 0
    %505 = vmatpush.bf16.msra.mxu0 0
    %506 = vmatpush.bf16.msra.mxu0 0
    %507 = vmatpush.bf16.msra.mxu0 0
    %508 = vmatpush.bf16.msra.mxu0 0
    %509 = vmatpush.bf16.msra.mxu0 %v264
    %510 = vmatpush.bf16.msra.mxu0 %v263
    %511 = vmatmul.bf16.gmra.mxu0 %v428
    %v512 = vpop.f32.mrf.mxu0
    %v513 = vadd.f32 0.0, %v512
    %v514 = vpop.f32.mrf.mxu0
    %515 = vdwg.mxu0
    %v516 = vadd.f32 %v502, %v513
    %v517 = vpack.c.bf16 %v488, %v488
    %v518 = vpack.c.bf16 %v516, %v516
    %v520 = vsel %vm187, %v518, 0
    %522 = vmatpush.bf16.msra.mxu0 0
    %523 = vmatpush.bf16.msra.mxu0 0
    %524 = vmatpush.bf16.msra.mxu0 0
    %525 = vmatpush.bf16.msra.mxu0 0
    %526 = vmatpush.bf16.msra.mxu0 0
    %527 = vmatpush.bf16.msra.mxu0 0
    %528 = vmatpush.bf16.msra.mxu0 0
    %529 = vmatpush.bf16.msra.mxu0 %v287
    %530 = vmatmul.bf16.gmra.mxu0 %v520
    %v531 = vpop.f32.mrf.mxu0
    %v532 = vadd.f32 0.0, %v531
    %v533 = vpop.f32.mrf.mxu0
    %534 = vdwg.mxu0
    %v536 = vsel %vm217, %v517, 0
    %538 = vmatpush.bf16.msra.mxu0 0
    %539 = vmatpush.bf16.msra.mxu0 0
    %540 = vmatpush.bf16.msra.mxu0 0
    %541 = vmatpush.bf16.msra.mxu0 0
    %542 = vmatpush.bf16.msra.mxu0 0
    %543 = vmatpush.bf16.msra.mxu0 0
    %544 = vmatpush.bf16.msra.mxu0 %v314
    %545 = vmatpush.bf16.msra.mxu0 %v313
    %546 = vmatmul.bf16.gmra.mxu0 %v536
    %v547 = vpop.f32.mrf.mxu0
    %v548 = vadd.f32 %v532, %v547
    %v549 = vpop.f32.mrf.mxu0
    %550 = vdwg.mxu0
    %v551 = vadd.f32 %v548, %v334
    %v552 = vsel %vm187, %v551, -inf
    %553 = vmax.xlane.f32.xlu0 %v552
    %v554 = vpop.xlane.xlu0 %553
    %v555 = vsub.f32 %v551, %v554
    %v556 = vmul.f32 %v555, 1.442695
    %v557 = vpow.pop %v556
    %v558 = vsel %vm187, %v557, 0.0
    %559 = vadd.xlane.f32.xlu0 %v558
    %v560 = vpop.xlane.xlu0 %559
    %v561 = vlog2.pop %v560
    %v562 = vmul.f32 %v561, 0.6931472
    %v563 = vsub.f32 %v555, %v562
    %s564 = scalar_lea.vmem [#allocation8], 16
    %565 = vst.msk [vmem:[%s564] sm:$0xff] %vm187, %v563
    %v567 = vsel %vm187, %v123, 0
    %569 = vmatpush.bf16.msra.mxu0 0
    %570 = vmatpush.bf16.msra.mxu0 0
    %571 = vmatpush.bf16.msra.mxu0 0
    %572 = vmatpush.bf16.msra.mxu0 0
    %573 = vmatpush.bf16.msra.mxu0 0
    %574 = vmatpush.bf16.msra.mxu0 0
    %575 = vmatpush.bf16.msra.mxu0 0
    %576 = vmatpush.bf16.msra.mxu0 %v185
    %577 = vmatmul.bf16.gmra.mxu0 %v567
    %v578 = vpop.f32.mrf.mxu0
    %v579 = vadd.f32 0.0, %v578
    %v580 = vpop.f32.mrf.mxu0
    %581 = vdwg.mxu0
    %v582 = vadd.f32 %v151, %v579
    %583 = vmatpush.bf16.msra.mxu0 0
    %584 = vmatpush.bf16.msra.mxu0 0
    %585 = vmatpush.bf16.msra.mxu0 0
    %586 = vmatpush.bf16.msra.mxu0 0
    %587 = vmatpush.bf16.msra.mxu0 0
    %588 = vmatpush.bf16.msra.mxu0 0
    %589 = vmatpush.bf16.msra.mxu0 %v214
    %590 = vmatpush.bf16.msra.mxu0 %v213
    %591 = vmatmul.bf16.gmra.mxu0 %v536
    %v592 = vpop.f32.mrf.mxu0
    %v593 = vadd.f32 0.0, %v592
    %v594 = vpop.f32.mrf.mxu0
    %595 = vdwg.mxu0
    %v596 = vadd.f32 %v582, %v593
    %597 = vmatpush.bf16.msra.mxu0 0
    %598 = vmatpush.bf16.msra.mxu0 0
    %599 = vmatpush.bf16.msra.mxu0 0
    %600 = vmatpush.bf16.msra.mxu0 0
    %601 = vmatpush.bf16.msra.mxu0 0
    %602 = vmatpush.bf16.msra.mxu0 0
    %603 = vmatpush.bf16.msra.mxu0 0
    %604 = vmatpush.bf16.msra.mxu0 %v239
    %605 = vmatmul.bf16.gmra.mxu0 %v567
    %v606 = vpop.f32.mrf.mxu0
    %v607 = vadd.f32 0.0, %v606
    %v608 = vpop.f32.mrf.mxu0
    %609 = vdwg.mxu0
    %v610 = vadd.f32 %v172, %v607
    %611 = vmatpush.bf16.msra.mxu0 0
    %612 = vmatpush.bf16.msra.mxu0 0
    %613 = vmatpush.bf16.msra.mxu0 0
    %614 = vmatpush.bf16.msra.mxu0 0
    %615 = vmatpush.bf16.msra.mxu0 0
    %616 = vmatpush.bf16.msra.mxu0 0
    %617 = vmatpush.bf16.msra.mxu0 %v264
    %618 = vmatpush.bf16.msra.mxu0 %v263
    %619 = vmatmul.bf16.gmra.mxu0 %v536
    %v620 = vpop.f32.mrf.mxu0
    %v621 = vadd.f32 0.0, %v620
    %v622 = vpop.f32.mrf.mxu0
    %623 = vdwg.mxu0
    %v624 = vadd.f32 %v610, %v621
    %v625 = vpack.c.bf16 %v596, %v596
    %v626 = vpack.c.bf16 %v624, %v624
    %v628 = vsel %vm187, %v626, 0
    %630 = vmatpush.bf16.msra.mxu0 0
    %631 = vmatpush.bf16.msra.mxu0 0
    %632 = vmatpush.bf16.msra.mxu0 0
    %633 = vmatpush.bf16.msra.mxu0 0
    %634 = vmatpush.bf16.msra.mxu0 0
    %635 = vmatpush.bf16.msra.mxu0 0
    %636 = vmatpush.bf16.msra.mxu0 0
    %637 = vmatpush.bf16.msra.mxu0 %v287
    %638 = vmatmul.bf16.gmra.mxu0 %v628
    %v639 = vpop.f32.mrf.mxu0
    %v640 = vadd.f32 0.0, %v639
    %v641 = vpop.f32.mrf.mxu0
    %642 = vdwg.mxu0
    %v644 = vsel %vm217, %v625, 0
    %646 = vmatpush.bf16.msra.mxu0 0
    %647 = vmatpush.bf16.msra.mxu0 0
    %648 = vmatpush.bf16.msra.mxu0 0
    %649 = vmatpush.bf16.msra.mxu0 0
    %650 = vmatpush.bf16.msra.mxu0 0
    %651 = vmatpush.bf16.msra.mxu0 0
    %652 = vmatpush.bf16.msra.mxu0 %v314
    %653 = vmatpush.bf16.msra.mxu0 %v313
    %654 = vmatmul.bf16.gmra.mxu0 %v644
    %v655 = vpop.f32.mrf.mxu0
    %v656 = vadd.f32 %v640, %v655
    %v657 = vpop.f32.mrf.mxu0
    %658 = vdwg.mxu0
    %v659 = vadd.f32 %v656, %v334
    %v660 = vsel %vm187, %v659, -inf
    %661 = vmax.xlane.f32.xlu0 %v660
    %v662 = vpop.xlane.xlu0 %661
    %v663 = vsub.f32 %v659, %v662
    %v664 = vmul.f32 %v663, 1.442695
    %v665 = vpow.pop %v664
    %v666 = vsel %vm187, %v665, 0.0
    %667 = vadd.xlane.f32.xlu0 %v666
    %v668 = vpop.xlane.xlu0 %667
    %v669 = vlog2.pop %v668
    %v670 = vmul.f32 %v669, 0.6931472
    %v671 = vsub.f32 %v663, %v670
    %s672 = scalar_lea.vmem [#allocation8], 24
    %673 = vst.msk [vmem:[%s672] sm:$0xff] %vm187, %v671
    %v675 = vsel %vm187, %v124, 0
    %677 = vmatpush.bf16.msra.mxu0 0
    %678 = vmatpush.bf16.msra.mxu0 0
    %679 = vmatpush.bf16.msra.mxu0 0
    %680 = vmatpush.bf16.msra.mxu0 0
    %681 = vmatpush.bf16.msra.mxu0 0
    %682 = vmatpush.bf16.msra.mxu0 0
    %683 = vmatpush.bf16.msra.mxu0 0
    %684 = vmatpush.bf16.msra.mxu0 %v185
    %685 = vmatmul.bf16.gmra.mxu0 %v675
    %v686 = vpop.f32.mrf.mxu0
    %v687 = vadd.f32 0.0, %v686
    %v688 = vpop.f32.mrf.mxu0
    %689 = vdwg.mxu0
    %v690 = vadd.f32 %v151, %v687
    %691 = vmatpush.bf16.msra.mxu0 0
    %692 = vmatpush.bf16.msra.mxu0 0
    %693 = vmatpush.bf16.msra.mxu0 0
    %694 = vmatpush.bf16.msra.mxu0 0
    %695 = vmatpush.bf16.msra.mxu0 0
    %696 = vmatpush.bf16.msra.mxu0 0
    %697 = vmatpush.bf16.msra.mxu0 %v214
    %698 = vmatpush.bf16.msra.mxu0 %v213
    %699 = vmatmul.bf16.gmra.mxu0 %v644
    %v700 = vpop.f32.mrf.mxu0
    %v701 = vadd.f32 0.0, %v700
    %v702 = vpop.f32.mrf.mxu0
    %703 = vdwg.mxu0
    %v704 = vadd.f32 %v690, %v701
    %705 = vmatpush.bf16.msra.mxu0 0
    %706 = vmatpush.bf16.msra.mxu0 0
    %707 = vmatpush.bf16.msra.mxu0 0
    %708 = vmatpush.bf16.msra.mxu0 0
    %709 = vmatpush.bf16.msra.mxu0 0
    %710 = vmatpush.bf16.msra.mxu0 0
    %711 = vmatpush.bf16.msra.mxu0 0
    %712 = vmatpush.bf16.msra.mxu0 %v239
    %713 = vmatmul.bf16.gmra.mxu0 %v675
    %v714 = vpop.f32.mrf.mxu0
    %v715 = vadd.f32 0.0, %v714
    %v716 = vpop.f32.mrf.mxu0
    %717 = vdwg.mxu0
    %v718 = vadd.f32 %v172, %v715
    %719 = vmatpush.bf16.msra.mxu0 0
    %720 = vmatpush.bf16.msra.mxu0 0
    %721 = vmatpush.bf16.msra.mxu0 0
    %722 = vmatpush.bf16.msra.mxu0 0
    %723 = vmatpush.bf16.msra.mxu0 0
    %724 = vmatpush.bf16.msra.mxu0 0
    %725 = vmatpush.bf16.msra.mxu0 %v264
    %726 = vmatpush.bf16.msra.mxu0 %v263
    %727 = vmatmul.bf16.gmra.mxu0 %v644
    %v728 = vpop.f32.mrf.mxu0
    %v729 = vadd.f32 0.0, %v728
    %v730 = vpop.f32.mrf.mxu0
    %731 = vdwg.mxu0
    %v732 = vadd.f32 %v718, %v729
    %v733 = vpack.c.bf16 %v704, %v704
    %v734 = vpack.c.bf16 %v732, %v732
    %v736 = vsel %vm187, %v734, 0
    %738 = vmatpush.bf16.msra.mxu0 0
    %739 = vmatpush.bf16.msra.mxu0 0
    %740 = vmatpush.bf16.msra.mxu0 0
    %741 = vmatpush.bf16.msra.mxu0 0
    %742 = vmatpush.bf16.msra.mxu0 0
    %743 = vmatpush.bf16.msra.mxu0 0
    %744 = vmatpush.bf16.msra.mxu0 0
    %745 = vmatpush.bf16.msra.mxu0 %v287
    %746 = vmatmul.bf16.gmra.mxu0 %v736
    %v747 = vpop.f32.mrf.mxu0
    %v748 = vadd.f32 0.0, %v747
    %v749 = vpop.f32.mrf.mxu0
    %750 = vdwg.mxu0
    %v752 = vsel %vm217, %v733, 0
    %754 = vmatpush.bf16.msra.mxu0 0
    %755 = vmatpush.bf16.msra.mxu0 0
    %756 = vmatpush.bf16.msra.mxu0 0
    %757 = vmatpush.bf16.msra.mxu0 0
    %758 = vmatpush.bf16.msra.mxu0 0
    %759 = vmatpush.bf16.msra.mxu0 0
    %760 = vmatpush.bf16.msra.mxu0 %v314
    %761 = vmatpush.bf16.msra.mxu0 %v313
    %762 = vmatmul.bf16.gmra.mxu0 %v752
    %v763 = vpop.f32.mrf.mxu0
    %v764 = vadd.f32 %v748, %v763
    %v765 = vpop.f32.mrf.mxu0
    %766 = vdwg.mxu0
    %v767 = vadd.f32 %v764, %v334
    %v768 = vsel %vm187, %v767, -inf
    %769 = vmax.xlane.f32.xlu0 %v768
    %v770 = vpop.xlane.xlu0 %769
    %v771 = vsub.f32 %v767, %v770
    %v772 = vmul.f32 %v771, 1.442695
    %v773 = vpow.pop %v772
    %v774 = vsel %vm187, %v773, 0.0
    %775 = vadd.xlane.f32.xlu0 %v774
    %v776 = vpop.xlane.xlu0 %775
    %v777 = vlog2.pop %v776
    %v778 = vmul.f32 %v777, 0.6931472
    %v779 = vsub.f32 %v771, %v778
    %s780 = scalar_lea.vmem [#allocation8], 32
    %781 = vst.msk [vmem:[%s780] sm:$0xff] %vm187, %v779
    %v783 = vsel %vm187, %v125, 0
    %785 = vmatpush.bf16.msra.mxu0 0
    %786 = vmatpush.bf16.msra.mxu0 0
    %787 = vmatpush.bf16.msra.mxu0 0
    %788 = vmatpush.bf16.msra.mxu0 0
    %789 = vmatpush.bf16.msra.mxu0 0
    %790 = vmatpush.bf16.msra.mxu0 0
    %791 = vmatpush.bf16.msra.mxu0 0
    %792 = vmatpush.bf16.msra.mxu0 %v185
    %793 = vmatmul.bf16.gmra.mxu0 %v783
    %v794 = vpop.f32.mrf.mxu0
    %v795 = vadd.f32 0.0, %v794
    %v796 = vpop.f32.mrf.mxu0
    %797 = vdwg.mxu0
    %v798 = vadd.f32 %v151, %v795
    %799 = vmatpush.bf16.msra.mxu0 0
    %800 = vmatpush.bf16.msra.mxu0 0
    %801 = vmatpush.bf16.msra.mxu0 0
    %802 = vmatpush.bf16.msra.mxu0 0
    %803 = vmatpush.bf16.msra.mxu0 0
    %804 = vmatpush.bf16.msra.mxu0 0
    %805 = vmatpush.bf16.msra.mxu0 %v214
    %806 = vmatpush.bf16.msra.mxu0 %v213
    %807 = vmatmul.bf16.gmra.mxu0 %v752
    %v808 = vpop.f32.mrf.mxu0
    %v809 = vadd.f32 0.0, %v808
    %v810 = vpop.f32.mrf.mxu0
    %811 = vdwg.mxu0
    %v812 = vadd.f32 %v798, %v809
    %813 = vmatpush.bf16.msra.mxu0 0
    %814 = vmatpush.bf16.msra.mxu0 0
    %815 = vmatpush.bf16.msra.mxu0 0
    %816 = vmatpush.bf16.msra.mxu0 0
    %817 = vmatpush.bf16.msra.mxu0 0
    %818 = vmatpush.bf16.msra.mxu0 0
    %819 = vmatpush.bf16.msra.mxu0 0
    %820 = vmatpush.bf16.msra.mxu0 %v239
    %821 = vmatmul.bf16.gmra.mxu0 %v783
    %v822 = vpop.f32.mrf.mxu0
    %v823 = vadd.f32 0.0, %v822
    %v824 = vpop.f32.mrf.mxu0
    %825 = vdwg.mxu0
    %v826 = vadd.f32 %v172, %v823
    %827 = vmatpush.bf16.msra.mxu0 0
    %828 = vmatpush.bf16.msra.mxu0 0
    %829 = vmatpush.bf16.msra.mxu0 0
    %830 = vmatpush.bf16.msra.mxu0 0
    %831 = vmatpush.bf16.msra.mxu0 0
    %832 = vmatpush.bf16.msra.mxu0 0
    %833 = vmatpush.bf16.msra.mxu0 %v264
    %834 = vmatpush.bf16.msra.mxu0 %v263
    %835 = vmatmul.bf16.gmra.mxu0 %v752
    %v836 = vpop.f32.mrf.mxu0
    %v837 = vadd.f32 0.0, %v836
    %v838 = vpop.f32.mrf.mxu0
    %839 = vdwg.mxu0
    %v840 = vadd.f32 %v826, %v837
    %v841 = vpack.c.bf16 %v812, %v812
    %v842 = vpack.c.bf16 %v840, %v840
    %v844 = vsel %vm187, %v842, 0
    %846 = vmatpush.bf16.msra.mxu0 0
    %847 = vmatpush.bf16.msra.mxu0 0
    %848 = vmatpush.bf16.msra.mxu0 0
    %849 = vmatpush.bf16.msra.mxu0 0
    %850 = vmatpush.bf16.msra.mxu0 0
    %851 = vmatpush.bf16.msra.mxu0 0
    %852 = vmatpush.bf16.msra.mxu0 0
    %853 = vmatpush.bf16.msra.mxu0 %v287
    %854 = vmatmul.bf16.gmra.mxu0 %v844
    %v855 = vpop.f32.mrf.mxu0
    %v856 = vadd.f32 0.0, %v855
    %v857 = vpop.f32.mrf.mxu0
    %858 = vdwg.mxu0
    %v860 = vsel %vm217, %v841, 0
    %862 = vmatpush.bf16.msra.mxu0 0
    %863 = vmatpush.bf16.msra.mxu0 0
    %864 = vmatpush.bf16.msra.mxu0 0
    %865 = vmatpush.bf16.msra.mxu0 0
    %866 = vmatpush.bf16.msra.mxu0 0
    %867 = vmatpush.bf16.msra.mxu0 0
    %868 = vmatpush.bf16.msra.mxu0 %v314
    %869 = vmatpush.bf16.msra.mxu0 %v313
    %870 = vmatmul.bf16.gmra.mxu0 %v860
    %v871 = vpop.f32.mrf.mxu0
    %v872 = vadd.f32 %v856, %v871
    %v873 = vpop.f32.mrf.mxu0
    %874 = vdwg.mxu0
    %v875 = vadd.f32 %v872, %v334
    %v876 = vsel %vm187, %v875, -inf
    %877 = vmax.xlane.f32.xlu0 %v876
    %v878 = vpop.xlane.xlu0 %877
    %v879 = vsub.f32 %v875, %v878
    %v880 = vmul.f32 %v879, 1.442695
    %v881 = vpow.pop %v880
    %v882 = vsel %vm187, %v881, 0.0
    %883 = vadd.xlane.f32.xlu0 %v882
    %v884 = vpop.xlane.xlu0 %883
    %v885 = vlog2.pop %v884
    %v886 = vmul.f32 %v885, 0.6931472
    %v887 = vsub.f32 %v879, %v886
    %s888 = scalar_lea.vmem [#allocation8], 40
    %889 = vst.msk [vmem:[%s888] sm:$0xff] %vm187, %v887
    %v891 = vsel %vm187, %v126, 0
    %893 = vmatpush.bf16.msra.mxu0 0
    %894 = vmatpush.bf16.msra.mxu0 0
    %895 = vmatpush.bf16.msra.mxu0 0
    %896 = vmatpush.bf16.msra.mxu0 0
    %897 = vmatpush.bf16.msra.mxu0 0
    %898 = vmatpush.bf16.msra.mxu0 0
    %899 = vmatpush.bf16.msra.mxu0 0
    %900 = vmatpush.bf16.msra.mxu0 %v185
    %901 = vmatmul.bf16.gmra.mxu0 %v891
    %v902 = vpop.f32.mrf.mxu0
    %v903 = vadd.f32 0.0, %v902
    %v904 = vpop.f32.mrf.mxu0
    %905 = vdwg.mxu0
    %v906 = vadd.f32 %v151, %v903
    %907 = vmatpush.bf16.msra.mxu0 0
    %908 = vmatpush.bf16.msra.mxu0 0
    %909 = vmatpush.bf16.msra.mxu0 0
    %910 = vmatpush.bf16.msra.mxu0 0
    %911 = vmatpush.bf16.msra.mxu0 0
    %912 = vmatpush.bf16.msra.mxu0 0
    %913 = vmatpush.bf16.msra.mxu0 %v214
    %914 = vmatpush.bf16.msra.mxu0 %v213
    %915 = vmatmul.bf16.gmra.mxu0 %v860
    %v916 = vpop.f32.mrf.mxu0
    %v917 = vadd.f32 0.0, %v916
    %v918 = vpop.f32.mrf.mxu0
    %919 = vdwg.mxu0
    %v920 = vadd.f32 %v906, %v917
    %921 = vmatpush.bf16.msra.mxu0 0
    %922 = vmatpush.bf16.msra.mxu0 0
    %923 = vmatpush.bf16.msra.mxu0 0
    %924 = vmatpush.bf16.msra.mxu0 0
    %925 = vmatpush.bf16.msra.mxu0 0
    %926 = vmatpush.bf16.msra.mxu0 0
    %927 = vmatpush.bf16.msra.mxu0 0
    %928 = vmatpush.bf16.msra.mxu0 %v239
    %929 = vmatmul.bf16.gmra.mxu0 %v891
    %v930 = vpop.f32.mrf.mxu0
    %v931 = vadd.f32 0.0, %v930
    %v932 = vpop.f32.mrf.mxu0
    %933 = vdwg.mxu0
    %v934 = vadd.f32 %v172, %v931
    %935 = vmatpush.bf16.msra.mxu0 0
    %936 = vmatpush.bf16.msra.mxu0 0
    %937 = vmatpush.bf16.msra.mxu0 0
    %938 = vmatpush.bf16.msra.mxu0 0
    %939 = vmatpush.bf16.msra.mxu0 0
    %940 = vmatpush.bf16.msra.mxu0 0
    %941 = vmatpush.bf16.msra.mxu0 %v264
    %942 = vmatpush.bf16.msra.mxu0 %v263
    %943 = vmatmul.bf16.gmra.mxu0 %v860
    %v944 = vpop.f32.mrf.mxu0
    %v945 = vadd.f32 0.0, %v944
    %v946 = vpop.f32.mrf.mxu0
    %947 = vdwg.mxu0
    %v948 = vadd.f32 %v934, %v945
    %v949 = vpack.c.bf16 %v920, %v920
    %v950 = vpack.c.bf16 %v948, %v948
    %v952 = vsel %vm187, %v950, 0
    %954 = vmatpush.bf16.msra.mxu0 0
    %955 = vmatpush.bf16.msra.mxu0 0
    %956 = vmatpush.bf16.msra.mxu0 0
    %957 = vmatpush.bf16.msra.mxu0 0
    %958 = vmatpush.bf16.msra.mxu0 0
    %959 = vmatpush.bf16.msra.mxu0 0
    %960 = vmatpush.bf16.msra.mxu0 0
    %961 = vmatpush.bf16.msra.mxu0 %v287
    %962 = vmatmul.bf16.gmra.mxu0 %v952
    %v963 = vpop.f32.mrf.mxu0
    %v964 = vadd.f32 0.0, %v963
    %v965 = vpop.f32.mrf.mxu0
    %966 = vdwg.mxu0
    %v968 = vsel %vm217, %v949, 0
    %970 = vmatpush.bf16.msra.mxu0 0
    %971 = vmatpush.bf16.msra.mxu0 0
    %972 = vmatpush.bf16.msra.mxu0 0
    %973 = vmatpush.bf16.msra.mxu0 0
    %974 = vmatpush.bf16.msra.mxu0 0
    %975 = vmatpush.bf16.msra.mxu0 0
    %976 = vmatpush.bf16.msra.mxu0 %v314
    %977 = vmatpush.bf16.msra.mxu0 %v313
    %978 = vmatmul.bf16.gmra.mxu0 %v968
    %v979 = vpop.f32.mrf.mxu0
    %v980 = vadd.f32 %v964, %v979
    %v981 = vpop.f32.mrf.mxu0
    %982 = vdwg.mxu0
    %v983 = vadd.f32 %v980, %v334
    %v984 = vsel %vm187, %v983, -inf
    %985 = vmax.xlane.f32.xlu0 %v984
    %v986 = vpop.xlane.xlu0 %985
    %v987 = vsub.f32 %v983, %v986
    %v988 = vmul.f32 %v987, 1.442695
    %v989 = vpow.pop %v988
    %v990 = vsel %vm187, %v989, 0.0
    %991 = vadd.xlane.f32.xlu0 %v990
    %v992 = vpop.xlane.xlu0 %991
    %v993 = vlog2.pop %v992
    %v994 = vmul.f32 %v993, 0.6931472
    %v995 = vsub.f32 %v987, %v994
    %s996 = scalar_lea.vmem [#allocation8], 48
    %997 = vst.msk [vmem:[%s996] sm:$0xff] %vm187, %v995
    %v999 = vsel %vm187, %v127, 0
    %1001 = vmatpush.bf16.msra.mxu0 0
    %1002 = vmatpush.bf16.msra.mxu0 0
    %1003 = vmatpush.bf16.msra.mxu0 0
    %1004 = vmatpush.bf16.msra.mxu0 0
    %1005 = vmatpush.bf16.msra.mxu0 0
    %1006 = vmatpush.bf16.msra.mxu0 0
    %1007 = vmatpush.bf16.msra.mxu0 0
    %1008 = vmatpush.bf16.msra.mxu0 %v185
    %1009 = vmatmul.bf16.gmra.mxu0 %v999
    %v1010 = vpop.f32.mrf.mxu0
    %v1011 = vadd.f32 0.0, %v1010
    %v1012 = vpop.f32.mrf.mxu0
    %1013 = vdwg.mxu0
    %v1014 = vadd.f32 %v151, %v1011
    %1015 = vmatpush.bf16.msra.mxu0 0
    %1016 = vmatpush.bf16.msra.mxu0 0
    %1017 = vmatpush.bf16.msra.mxu0 0
    %1018 = vmatpush.bf16.msra.mxu0 0
    %1019 = vmatpush.bf16.msra.mxu0 0
    %1020 = vmatpush.bf16.msra.mxu0 0
    %1021 = vmatpush.bf16.msra.mxu0 %v214
    %1022 = vmatpush.bf16.msra.mxu0 %v213
    %1023 = vmatmul.bf16.gmra.mxu0 %v968
    %v1024 = vpop.f32.mrf.mxu0
    %v1025 = vadd.f32 0.0, %v1024
    %v1026 = vpop.f32.mrf.mxu0
    %1027 = vdwg.mxu0
    %v1028 = vadd.f32 %v1014, %v1025
    %1029 = vmatpush.bf16.msra.mxu0 0
    %1030 = vmatpush.bf16.msra.mxu0 0
    %1031 = vmatpush.bf16.msra.mxu0 0
    %1032 = vmatpush.bf16.msra.mxu0 0
    %1033 = vmatpush.bf16.msra.mxu0 0
    %1034 = vmatpush.bf16.msra.mxu0 0
    %1035 = vmatpush.bf16.msra.mxu0 0
    %1036 = vmatpush.bf16.msra.mxu0 %v239
    %1037 = vmatmul.bf16.gmra.mxu0 %v999
    %v1038 = vpop.f32.mrf.mxu0
    %v1039 = vadd.f32 0.0, %v1038
    %v1040 = vpop.f32.mrf.mxu0
    %1041 = vdwg.mxu0
    %v1042 = vadd.f32 %v172, %v1039
    %1043 = vmatpush.bf16.msra.mxu0 0
    %1044 = vmatpush.bf16.msra.mxu0 0
    %1045 = vmatpush.bf16.msra.mxu0 0
    %1046 = vmatpush.bf16.msra.mxu0 0
    %1047 = vmatpush.bf16.msra.mxu0 0
    %1048 = vmatpush.bf16.msra.mxu0 0
    %1049 = vmatpush.bf16.msra.mxu0 %v264
    %1050 = vmatpush.bf16.msra.mxu0 %v263
    %1051 = vmatmul.bf16.gmra.mxu0 %v968
    %v1052 = vpop.f32.mrf.mxu0
    %v1053 = vadd.f32 0.0, %v1052
    %v1054 = vpop.f32.mrf.mxu0
    %1055 = vdwg.mxu0
    %v1056 = vadd.f32 %v1042, %v1053
    %v1057 = vpack.c.bf16 %v1028, %v1028
    %v1058 = vpack.c.bf16 %v1056, %v1056
    %v1060 = vsel %vm187, %v1058, 0
    %1062 = vmatpush.bf16.msra.mxu0 0
    %1063 = vmatpush.bf16.msra.mxu0 0
    %1064 = vmatpush.bf16.msra.mxu0 0
    %1065 = vmatpush.bf16.msra.mxu0 0
    %1066 = vmatpush.bf16.msra.mxu0 0
    %1067 = vmatpush.bf16.msra.mxu0 0
    %1068 = vmatpush.bf16.msra.mxu0 0
    %1069 = vmatpush.bf16.msra.mxu0 %v287
    %1070 = vmatmul.bf16.gmra.mxu0 %v1060
    %v1071 = vpop.f32.mrf.mxu0
    %v1072 = vadd.f32 0.0, %v1071
    %v1073 = vpop.f32.mrf.mxu0
    %1074 = vdwg.mxu0
    %v1076 = vsel %vm217, %v1057, 0
    %1078 = vmatpush.bf16.msra.mxu0 0
    %1079 = vmatpush.bf16.msra.mxu0 0
    %1080 = vmatpush.bf16.msra.mxu0 0
    %1081 = vmatpush.bf16.msra.mxu0 0
    %1082 = vmatpush.bf16.msra.mxu0 0
    %1083 = vmatpush.bf16.msra.mxu0 0
    %1084 = vmatpush.bf16.msra.mxu0 %v314
    %1085 = vmatpush.bf16.msra.mxu0 %v313
    %1086 = vmatmul.bf16.gmra.mxu0 %v1076
    %v1087 = vpop.f32.mrf.mxu0
    %v1088 = vadd.f32 %v1072, %v1087
    %v1089 = vpop.f32.mrf.mxu0
    %1090 = vdwg.mxu0
    %v1091 = vadd.f32 %v1088, %v334
    %v1092 = vsel %vm187, %v1091, -inf
    %1093 = vmax.xlane.f32.xlu0 %v1092
    %v1094 = vpop.xlane.xlu0 %1093
    %v1095 = vsub.f32 %v1091, %v1094
    %v1096 = vmul.f32 %v1095, 1.442695
    %v1097 = vpow.pop %v1096
    %v1098 = vsel %vm187, %v1097, 0.0
    %1099 = vadd.xlane.f32.xlu0 %v1098
    %v1100 = vpop.xlane.xlu0 %1099
    %v1101 = vlog2.pop %v1100
    %v1102 = vmul.f32 %v1101, 0.6931472
    %v1103 = vsub.f32 %v1095, %v1102
    %s1104 = scalar_lea.vmem [#allocation8], 56
    %1105 = vst.msk [vmem:[%s1104] sm:$0xff] %vm187, %v1103
    %1106 = vst.msk [vmem:[#allocation9] sm:$0xff] %vm217, %v1028
    // Predicated region
    $region70: #{tpu_custom_call.1} parent=1 // pred_check
      _
    $region71: #{tpu_custom_call.1} parent=1 // pred_check_branch
      %1108 = sbr.rel (0) target = $region73
    $region72: #{tpu_custom_call.1} parent=1 // pred_region
      %1110 = vsyncadd [#allocation4], 0
      %s1111 = sshll.u32 [#allocation8], 4
      %s1112 = int_to_ptr.vmem [resolvable:$true] %s1111
      %s1113 = sshll.u32 %s14, 4
      %s1114 = int_to_ptr.hbm [resolvable:$true] %s1113
      %1119 = dma.vmem_to_hbm [thread:$0]  %s1112, 1024, %s1114, [#allocation4], 128, 128, 8
    $region73: #{tpu_custom_call.1} parent=1 // pred_fallthru
      _
    // Predicated region
    $region74: #{tpu_custom_call.1} parent=1 // pred_check
      _
    $region75: #{tpu_custom_call.1} parent=1 // pred_check_branch
      %1121 = sbr.rel (0) target = $region77
    $region76: #{tpu_custom_call.1} parent=1 // pred_region
      %1123 = vsyncadd [#allocation10], 0
      %s1125 = sshll.u32 [#allocation9], 4
      %s1126 = int_to_ptr.vmem [resolvable:$true] %s1125
      %s1127 = sshll.u32 %s15, 4
      %s1128 = int_to_ptr.hbm [resolvable:$true] %s1127
      %1130 = dma.vmem_to_hbm [thread:$0]  %s1126, 128, %s1128, [#allocation10]
    $region77: #{tpu_custom_call.1} parent=1 // pred_fallthru
      _
    // Predicated region
    $region78: #{tpu_custom_call.1} parent=1 // pred_check
      _
    $region79: #{tpu_custom_call.1} parent=1 // pred_check_branch
      %1132 = sbr.rel (0) target = $region81
    $region80: #{tpu_custom_call.1} parent=1 // pred_region
      %1134 = dma.done [#allocation4], 1024
    $region81: #{tpu_custom_call.1} parent=1 // pred_fallthru
      _
    // Predicated region
    $region82: #{tpu_custom_call.1} parent=1 // pred_check
      _
    $region83: #{tpu_custom_call.1} parent=1 // pred_check_branch
      %1136 = sbr.rel (0) target = $region85
    $region84: #{tpu_custom_call.1} parent=1 // pred_region
      %1138 = dma.done [#allocation10], 128
    $region85: #{tpu_custom_call.1} parent=1 // pred_fallthru
      _
    %1139 = vsyncpa [#allocation3], 1
    %1140 = vsyncpa [#allocation6], 1
    %1141 = vsyncpa [#allocation4], 1
    %1142 = vsyncpa [#allocation10], 1

</llo_original>
